<compile_context>
chip_gen: v5e
topology: v5e:2x2
jax: 0.10.0
libtpu: 0.0.40
codegen_flags: <defaults>
</compile_context>

<pallas_src>
import functools

import jax
import jax.numpy as jnp
from jax import lax
from jax.experimental import pallas as pl
from jax.experimental.pallas import tpu as pltpu

BN_EPS = 1e-5


def _ds_conv_kernel(x_ref, wd_ref, dshift_ref, wp_ref, pshift_ref, o_ref, xp_scr,
                    *, ksize, strip):
    """One block of `nb` (unpadded) NHWC images per grid step.

    x_ref:      (nb, H, W, Cin)        input tile
    wd_ref:     (ksize*ksize, Cin)     depthwise taps, BN1 scale pre-folded (f32)
    dshift_ref: (1, Cin)               BN1 shift (f32)
    wp_ref:     (Cin, Cout)            pointwise weight, BN2 scale pre-folded (bf16)
    pshift_ref: (1, Cout)              BN2 shift (f32)
    o_ref:      (nb, H, W, Cout)
    xp_scr:     (nb, H+2p, W+2p, Cin)  f32 VMEM scratch (in-kernel zero padding)
    """
    nb, H, W, c_in = x_ref.shape
    c_out = o_ref.shape[-1]
    pad = ksize // 2

    # ---- in-kernel zero padding (no wrapper-side jnp.pad / extra HBM pass).
    # Full memset keeps the halo zero regardless of grid sharding across cores;
    # the interior is overwritten every step.
    xp_scr[...] = jnp.zeros_like(xp_scr)
    xp_scr[:, pad:pad + H, pad:pad + W, :] = x_ref[...].astype(jnp.float32)

    dshift = dshift_ref[0, :]                        # (Cin,)  f32
    pshift = pshift_ref[0, :]                        # (Cout,) f32
    wp = wp_ref[...]                                 # (Cin, Cout) bf16, resident

    n_strips = H // strip
    for b in range(nb):                              # unrolled, nb is small
        for s in range(n_strips):                    # unrolled H strips (bounded vregs)
            h0 = s * strip
            # Hoist the W-axis (sublane) shift: ONE shifted read per dw per strip;
            # the dh taps below are free leading-axis offsets of these views.
            xw = [xp_scr[b:b + 1, h0:h0 + strip + 2 * pad, dw:dw + W, :]
                  for dw in range(ksize)]            # each (1, strip+2p, W, Cin) f32

            acc = jnp.zeros((1, strip, W, c_in), jnp.float32)
            for dh in range(ksize):                  # unrolled 3x3 taps (VPU, f32)
                for dw in range(ksize):
                    acc = acc + xw[dw][:, dh:dh + strip] * wd_ref[dh * ksize + dw, :]

            # BN1 shift (scale folded into wd) + ReLU6.
            hstrip = jnp.clip(acc + dshift, 0.0, 6.0)          # (1, strip, W, Cin)

            # Pointwise 1x1 conv + BN2: bf16 MXU matmul, f32 accumulation.
            m = hstrip.reshape(strip * W, c_in).astype(jnp.bfloat16)
            outm = jnp.dot(m, wp, preferred_element_type=jnp.float32) + pshift
            o_ref[b:b + 1, h0:h0 + strip, :, :] = (
                outm.reshape(1, strip, W, c_out).astype(o_ref.dtype))


def ds_conv_forward(x_nchw,
                    w_dw, g1, b1, m1, v1,      # depthwise conv weight + BN1 params
                    w_pw, g2, b2, m2, v2,      # pointwise conv weight + BN2 params
                    *, eps=BN_EPS):
    """x_nchw: (N, C, H, W).  PyTorch layouts:
       w_dw: (C, 1, K, K)    depthwise conv weight (groups=C, no bias)
       w_pw: (Cout, C, 1, 1) pointwise conv weight (no bias)
       g/b/m/v: BatchNorm weight / bias / running_mean / running_var."""
    N, C, H, W = x_nchw.shape
    c_out = w_pw.shape[0]
    K = w_dw.shape[-1]
    pad = K // 2

    # ---- fold eval-mode BN into the conv weights (wrapper-side constant math) ----
    s1 = g1 / jnp.sqrt(v1 + eps)                                          # (C,)
    wd = (w_dw.reshape(C, K, K) * s1[:, None, None])                      # scale folded
    wd = jnp.transpose(wd, (1, 2, 0)).reshape(K * K, C).astype(jnp.float32)
    dshift = (b1 - m1 * s1).reshape(1, C).astype(jnp.float32)

    s2 = g2 / jnp.sqrt(v2 + eps)                                          # (Cout,)
    # bf16 pointwise weight: MXU-native on v5e/v6e/v7x (f32 matmul is emulated).
    wp = (w_pw.reshape(c_out, C).T * s2[None, :]).astype(jnp.bfloat16)    # (C, Cout)
    pshift = (b2 - m2 * s2).reshape(1, c_out).astype(jnp.float32)

    # NHWC: channels on the lane axis (lane-dense when C % 128 == 0).
    # TODO(synk): keep NHWC end-to-end if the surrounding model allows; the
    # PyTorch spec is NCHW so we convert at the boundary.
    x_nhwc = jnp.transpose(x_nchw, (0, 2, 3, 1))

    # H-strip height: keeps the f32 depthwise accumulator within a few vregs.
    strip = next(s for s in (4, 2, 1) if H % s == 0)

    # Batch-block: amortize per-grid-step overhead, but keep >=2 grid steps
    # (both v7x TensorCores fed) and stay well inside scoped VMEM.
    itemsize = x_nchw.dtype.itemsize
    nb = 1
    for cand in range(1, N + 1):
        if N % cand:
            continue
        if N >= 2 and N // cand < 2:
            continue
        vmem_bytes = (cand * (H + 2 * pad) * (W + 2 * pad) * C * 4          # scratch
                      + 2 * cand * H * W * C * itemsize                     # in (x2 buf)
                      + 2 * cand * H * W * c_out * itemsize)                # out (x2 buf)
        if vmem_bytes <= 24 * 1024 * 1024:
            nb = cand

    kernel = functools.partial(_ds_conv_kernel, ksize=K, strip=strip)

    out = pl.pallas_call(
        kernel,
        out_shape=jax.ShapeDtypeStruct((N, H, W, c_out), x_nchw.dtype),
        grid_spec=pltpu.PrefetchScalarGridSpec(
            num_scalar_prefetch=0,
            grid=(N // nb,),
            in_specs=[
                pl.BlockSpec((nb, H, W, C), lambda n: (n, 0, 0, 0)),
                pl.BlockSpec((K * K, C), lambda n: (0, 0)),
                pl.BlockSpec((1, C), lambda n: (0, 0)),
                pl.BlockSpec((C, c_out), lambda n: (0, 0)),
                pl.BlockSpec((1, c_out), lambda n: (0, 0)),
            ],
            out_specs=pl.BlockSpec((nb, H, W, c_out), lambda n: (n, 0, 0, 0)),
            scratch_shapes=[
                pltpu.VMEM((nb, H + 2 * pad, W + 2 * pad, C), jnp.float32),
            ],
        ),
        compiler_params=pltpu.CompilerParams(
            dimension_semantics=("parallel",),        # batch steps shard on v7x megacore
            vmem_limit_bytes=32 * 1024 * 1024,        # safe on v5e/v6e/v7x
        ),
    )(x_nhwc, wd, dshift, wp, pshift)

    return jnp.transpose(out, (0, 3, 1, 2))           # back to NCHW


def reference_ds_conv(x, w_dw, g1, b1, m1, v1, w_pw, g2, b2, m2, v2, eps=BN_EPS):
    """Pure-JAX reference matching PyTorch DsConvLayer in eval mode."""
    N, C, H, W = x.shape
    y = lax.conv_general_dilated(
        x, w_dw, window_strides=(1, 1), padding=((1, 1), (1, 1)),
        dimension_numbers=("NCHW", "OIHW", "NCHW"), feature_group_count=C)
    y = ((y - m1[None, :, None, None])
         * (g1 / jnp.sqrt(v1 + eps))[None, :, None, None]
         + b1[None, :, None, None])
    y = jnp.clip(y, 0.0, 6.0)                                   # ReLU6
    z = lax.conv_general_dilated(
        y, w_pw, window_strides=(1, 1), padding="VALID",
        dimension_numbers=("NCHW", "OIHW", "NCHW"))
    z = ((z - m2[None, :, None, None])
         * (g2 / jnp.sqrt(v2 + eps))[None, :, None, None]
         + b2[None, :, None, None])
    return z


if __name__ == "__main__":
    # DsConvLayer(in_channels=128, out_channels=128, kernel_size=3, stride=1)
    # C chosen as a multiple of 128 so the lane axis is dense.
    N, C_in, C_out, H, W = 2, 128, 128, 16, 16
    K = 3

    key = jax.random.PRNGKey(0)
    ks = jax.random.split(key, 11)

    x = jax.random.normal(ks[0], (N, C_in, H, W), dtype=jnp.float32)
    # depthwise conv weight (C, 1, K, K), pointwise conv weight (Cout, Cin, 1, 1)
    w_dw = 0.2 * jax.random.normal(ks[1], (C_in, 1, K, K), dtype=jnp.float32)
    g1 = 1.0 + 0.1 * jax.random.normal(ks[2], (C_in,), dtype=jnp.float32)
    b1 = 0.1 * jax.random.normal(ks[3], (C_in,), dtype=jnp.float32)
    m1 = 0.1 * jax.random.normal(ks[4], (C_in,), dtype=jnp.float32)
    v1 = 0.5 + jnp.abs(jax.random.normal(ks[5], (C_in,), dtype=jnp.float32))
    w_pw = 0.1 * jax.random.normal(ks[6], (C_out, C_in, 1, 1), dtype=jnp.float32)
    g2 = 1.0 + 0.1 * jax.random.normal(ks[7], (C_out,), dtype=jnp.float32)
    b2 = 0.1 * jax.random.normal(ks[8], (C_out,), dtype=jnp.float32)
    m2 = 0.1 * jax.random.normal(ks[9], (C_out,), dtype=jnp.float32)
    v2 = 0.5 + jnp.abs(jax.random.normal(ks[10], (C_out,), dtype=jnp.float32))

    out = ds_conv_forward(x, w_dw, g1, b1, m1, v1, w_pw, g2, b2, m2, v2)
    out = jax.block_until_ready(out)

    ref = reference_ds_conv(x, w_dw, g1, b1, m1, v1, w_pw, g2, b2, m2, v2)
    assert out.shape == (N, C_out, H, W)
    # Tolerance loosened vs. the pure-f32 version: the pointwise matmul now runs
    # with bf16 operands (f32 accumulation) on the MXU.
    assert jnp.allclose(out, ref, atol=5e-2, rtol=5e-2), \
        float(jnp.max(jnp.abs(out - ref)))

    print("KERNEL_OK")
</pallas_src>

<mosaic_0001>
module attributes {stable_mosaic.version = 11 : i64} {
  func.func @_ds_conv_kernel(%arg0: i32, %arg1: memref<1x16x16x128xf32, #tpu.memory_space<vmem>>, %arg2: memref<9x128xf32, #tpu.memory_space<vmem>>, %arg3: memref<1x128xf32, #tpu.memory_space<vmem>>, %arg4: memref<128x128xbf16, #tpu.memory_space<vmem>>, %arg5: memref<1x128xf32, #tpu.memory_space<vmem>>, %arg6: memref<1x16x16x128xf32, #tpu.memory_space<vmem>>, %arg7: memref<1x18x18x128xf32, #tpu.memory_space<vmem>>) attributes {dimension_semantics = [#tpu.dimension_semantics<parallel>], iteration_bounds = array<i64: 2>, scalar_prefetch = 0 : i64, scratch_operands = 1 : i64, tpu.core_type = #tpu.core_type<tc>, window_params = [{transform_indices = @transform_0, window_bounds = array<i64: 1, 16, 16, 128>}, {pipeline_mode = #tpu.pipeline_mode<synchronous>, transform_indices = @transform_1, window_bounds = array<i64: 9, 128>}, {pipeline_mode = #tpu.pipeline_mode<synchronous>, transform_indices = @transform_2, window_bounds = array<i64: 1, 128>}, {pipeline_mode = #tpu.pipeline_mode<synchronous>, transform_indices = @transform_3, window_bounds = array<i64: 128, 128>}, {pipeline_mode = #tpu.pipeline_mode<synchronous>, transform_indices = @transform_4, window_bounds = array<i64: 1, 128>}, {transform_indices = @transform_5, window_bounds = array<i64: 1, 16, 16, 128>}]} {
    %cst = arith.constant 0.000000e+00 : f32
    %0 = vector.broadcast %cst : f32 to vector<1x18x18x128xf32>
    %c0 = arith.constant 0 : index
    %c0_0 = arith.constant 0 : index
    %c0_1 = arith.constant 0 : index
    %c0_2 = arith.constant 0 : index
    %1 = vector.load %arg7[%c0, %c0_0, %c0_1, %c0_2] : memref<1x18x18x128xf32, #tpu.memory_space<vmem>>, vector<1x18x18x128xf32>
    tpu.vector_store %arg7[%c0, %c0_0, %c0_1, %c0_2], %0 {strides = array<i32>} : memref<1x18x18x128xf32, #tpu.memory_space<vmem>>, vector<1x18x18x128xf32>,
    %c0_3 = arith.constant 0 : index
    %c0_4 = arith.constant 0 : index
    %c0_5 = arith.constant 0 : index
    %c0_6 = arith.constant 0 : index
    %2 = vector.load %arg1[%c0_3, %c0_4, %c0_5, %c0_6] : memref<1x16x16x128xf32, #tpu.memory_space<vmem>>, vector<1x16x16x128xf32>
    %c0_7 = arith.constant 0 : index
    %c1 = arith.constant 1 : index
    %c1_8 = arith.constant 1 : index
    %c0_9 = arith.constant 0 : index
    %3 = vector.load %arg7[%c0_7, %c1, %c1_8, %c0_9] : memref<1x18x18x128xf32, #tpu.memory_space<vmem>>, vector<1x16x16x128xf32>
    tpu.vector_store %arg7[%c0_7, %c1, %c1_8, %c0_9], %2 {strides = array<i32>} : memref<1x18x18x128xf32, #tpu.memory_space<vmem>>, vector<1x16x16x128xf32>,
    %c0_10 = arith.constant 0 : index
    %c0_11 = arith.constant 0 : index
    %4 = vector.load %arg3[%c0_10, %c0_11] : memref<1x128xf32, #tpu.memory_space<vmem>>, vector<1x128xf32>
    %5 = vector.shape_cast %4 : vector<1x128xf32> to vector<128xf32>
    %c0_12 = arith.constant 0 : index
    %c0_13 = arith.constant 0 : index
    %6 = vector.load %arg5[%c0_12, %c0_13] : memref<1x128xf32, #tpu.memory_space<vmem>>, vector<1x128xf32>
    %7 = vector.shape_cast %6 : vector<1x128xf32> to vector<128xf32>
    %c0_14 = arith.constant 0 : index
    %c0_15 = arith.constant 0 : index
    %8 = vector.load %arg4[%c0_14, %c0_15] : memref<128x128xbf16, #tpu.memory_space<vmem>>, vector<128x128xbf16>
    %c0_16 = arith.constant 0 : index
    %c0_17 = arith.constant 0 : index
    %c0_18 = arith.constant 0 : index
    %c0_19 = arith.constant 0 : index
    %9 = vector.load %arg7[%c0_16, %c0_17, %c0_18, %c0_19] : memref<1x18x18x128xf32, #tpu.memory_space<vmem>>, vector<1x6x16x128xf32>
    %c0_20 = arith.constant 0 : index
    %c0_21 = arith.constant 0 : index
    %c1_22 = arith.constant 1 : index
    %c0_23 = arith.constant 0 : index
    %10 = vector.load %arg7[%c0_20, %c0_21, %c1_22, %c0_23] : memref<1x18x18x128xf32, #tpu.memory_space<vmem>>, vector<1x6x16x128xf32>
    %c0_24 = arith.constant 0 : index
    %c0_25 = arith.constant 0 : index
    %c2 = arith.constant 2 : index
    %c0_26 = arith.constant 0 : index
    %11 = vector.load %arg7[%c0_24, %c0_25, %c2, %c0_26] : memref<1x18x18x128xf32, #tpu.memory_space<vmem>>, vector<1x6x16x128xf32>
    %cst_27 = arith.constant 0.000000e+00 : f32
    %12 = vector.broadcast %cst_27 : f32 to vector<1x4x16x128xf32>
    %13 = vector.extract_strided_slice %9 {offsets = [0, 0, 0, 0], sizes = [1, 4, 16, 128], strides = [1, 1, 1, 1]} : vector<1x6x16x128xf32> to vector<1x4x16x128xf32>
    %c0_28 = arith.constant 0 : index
    %c0_29 = arith.constant 0 : index
    %14 = vector.load %arg2[%c0_28, %c0_29] : memref<9x128xf32, #tpu.memory_space<vmem>>, vector<1x128xf32>
    %15 = vector.shape_cast %14 : vector<1x128xf32> to vector<128xf32>
    %16 = vector.shape_cast %15 : vector<128xf32> to vector<1x1x1x128xf32>
    %17 = vector.broadcast %16 : vector<1x1x1x128xf32> to vector<1x4x16x128xf32>
    %18 = arith.mulf %13, %17 : vector<1x4x16x128xf32>
    %19 = arith.addf %12, %18 : vector<1x4x16x128xf32>
    %20 = vector.extract_strided_slice %10 {offsets = [0, 0, 0, 0], sizes = [1, 4, 16, 128], strides = [1, 1, 1, 1]} : vector<1x6x16x128xf32> to vector<1x4x16x128xf32>
    %c1_30 = arith.constant 1 : index
    %c0_31 = arith.constant 0 : index
    %21 = vector.load %arg2[%c1_30, %c0_31] : memref<9x128xf32, #tpu.memory_space<vmem>>, vector<1x128xf32>
    %22 = vector.shape_cast %21 : vector<1x128xf32> to vector<128xf32>
    %23 = vector.shape_cast %22 : vector<128xf32> to vector<1x1x1x128xf32>
    %24 = vector.broadcast %23 : vector<1x1x1x128xf32> to vector<1x4x16x128xf32>
    %25 = arith.mulf %20, %24 : vector<1x4x16x128xf32>
    %26 = arith.addf %19, %25 : vector<1x4x16x128xf32>
    %27 = vector.extract_strided_slice %11 {offsets = [0, 0, 0, 0], sizes = [1, 4, 16, 128], strides = [1, 1, 1, 1]} : vector<1x6x16x128xf32> to vector<1x4x16x128xf32>
    %c2_32 = arith.constant 2 : index
    %c0_33 = arith.constant 0 : index
    %28 = vector.load %arg2[%c2_32, %c0_33] : memref<9x128xf32, #tpu.memory_space<vmem>>, vector<1x128xf32>
    %29 = vector.shape_cast %28 : vector<1x128xf32> to vector<128xf32>
    %30 = vector.shape_cast %29 : vector<128xf32> to vector<1x1x1x128xf32>
    %31 = vector.broadcast %30 : vector<1x1x1x128xf32> to vector<1x4x16x128xf32>
    %32 = arith.mulf %27, %31 : vector<1x4x16x128xf32>
    %33 = arith.addf %26, %32 : vector<1x4x16x128xf32>
    %34 = vector.extract_strided_slice %9 {offsets = [0, 1, 0, 0], sizes = [1, 4, 16, 128], strides = [1, 1, 1, 1]} : vector<1x6x16x128xf32> to vector<1x4x16x128xf32>
    %c3 = arith.constant 3 : index
    %c0_34 = arith.constant 0 : index
    %35 = vector.load %arg2[%c3, %c0_34] : memref<9x128xf32, #tpu.memory_space<vmem>>, vector<1x128xf32>
    %36 = vector.shape_cast %35 : vector<1x128xf32> to vector<128xf32>
    %37 = vector.shape_cast %36 : vector<128xf32> to vector<1x1x1x128xf32>
    %38 = vector.broadcast %37 : vector<1x1x1x128xf32> to vector<1x4x16x128xf32>
    %39 = arith.mulf %34, %38 : vector<1x4x16x128xf32>
    %40 = arith.addf %33, %39 : vector<1x4x16x128xf32>
    %41 = vector.extract_strided_slice %10 {offsets = [0, 1, 0, 0], sizes = [1, 4, 16, 128], strides = [1, 1, 1, 1]} : vector<1x6x16x128xf32> to vector<1x4x16x128xf32>
    %c4 = arith.constant 4 : index
    %c0_35 = arith.constant 0 : index
    %42 = vector.load %arg2[%c4, %c0_35] : memref<9x128xf32, #tpu.memory_space<vmem>>, vector<1x128xf32>
    %43 = vector.shape_cast %42 : vector<1x128xf32> to vector<128xf32>
    %44 = vector.shape_cast %43 : vector<128xf32> to vector<1x1x1x128xf32>
    %45 = vector.broadcast %44 : vector<1x1x1x128xf32> to vector<1x4x16x128xf32>
    %46 = arith.mulf %41, %45 : vector<1x4x16x128xf32>
    %47 = arith.addf %40, %46 : vector<1x4x16x128xf32>
    %48 = vector.extract_strided_slice %11 {offsets = [0, 1, 0, 0], sizes = [1, 4, 16, 128], strides = [1, 1, 1, 1]} : vector<1x6x16x128xf32> to vector<1x4x16x128xf32>
    %c5 = arith.constant 5 : index
    %c0_36 = arith.constant 0 : index
    %49 = vector.load %arg2[%c5, %c0_36] : memref<9x128xf32, #tpu.memory_space<vmem>>, vector<1x128xf32>
    %50 = vector.shape_cast %49 : vector<1x128xf32> to vector<128xf32>
    %51 = vector.shape_cast %50 : vector<128xf32> to vector<1x1x1x128xf32>
    %52 = vector.broadcast %51 : vector<1x1x1x128xf32> to vector<1x4x16x128xf32>
    %53 = arith.mulf %48, %52 : vector<1x4x16x128xf32>
    %54 = arith.addf %47, %53 : vector<1x4x16x128xf32>
    %55 = vector.extract_strided_slice %9 {offsets = [0, 2, 0, 0], sizes = [1, 4, 16, 128], strides = [1, 1, 1, 1]} : vector<1x6x16x128xf32> to vector<1x4x16x128xf32>
    %c6 = arith.constant 6 : index
    %c0_37 = arith.constant 0 : index
    %56 = vector.load %arg2[%c6, %c0_37] : memref<9x128xf32, #tpu.memory_space<vmem>>, vector<1x128xf32>
    %57 = vector.shape_cast %56 : vector<1x128xf32> to vector<128xf32>
    %58 = vector.shape_cast %57 : vector<128xf32> to vector<1x1x1x128xf32>
    %59 = vector.broadcast %58 : vector<1x1x1x128xf32> to vector<1x4x16x128xf32>
    %60 = arith.mulf %55, %59 : vector<1x4x16x128xf32>
    %61 = arith.addf %54, %60 : vector<1x4x16x128xf32>
    %62 = vector.extract_strided_slice %10 {offsets = [0, 2, 0, 0], sizes = [1, 4, 16, 128], strides = [1, 1, 1, 1]} : vector<1x6x16x128xf32> to vector<1x4x16x128xf32>
    %c7 = arith.constant 7 : index
    %c0_38 = arith.constant 0 : index
    %63 = vector.load %arg2[%c7, %c0_38] : memref<9x128xf32, #tpu.memory_space<vmem>>, vector<1x128xf32>
    %64 = vector.shape_cast %63 : vector<1x128xf32> to vector<128xf32>
    %65 = vector.shape_cast %64 : vector<128xf32> to vector<1x1x1x128xf32>
    %66 = vector.broadcast %65 : vector<1x1x1x128xf32> to vector<1x4x16x128xf32>
    %67 = arith.mulf %62, %66 : vector<1x4x16x128xf32>
    %68 = arith.addf %61, %67 : vector<1x4x16x128xf32>
    %69 = vector.extract_strided_slice %11 {offsets = [0, 2, 0, 0], sizes = [1, 4, 16, 128], strides = [1, 1, 1, 1]} : vector<1x6x16x128xf32> to vector<1x4x16x128xf32>
    %c8 = arith.constant 8 : index
    %c0_39 = arith.constant 0 : index
    %70 = vector.load %arg2[%c8, %c0_39] : memref<9x128xf32, #tpu.memory_space<vmem>>, vector<1x128xf32>
    %71 = vector.shape_cast %70 : vector<1x128xf32> to vector<128xf32>
    %72 = vector.shape_cast %71 : vector<128xf32> to vector<1x1x1x128xf32>
    %73 = vector.broadcast %72 : vector<1x1x1x128xf32> to vector<1x4x16x128xf32>
    %74 = arith.mulf %69, %73 : vector<1x4x16x128xf32>
    %75 = arith.addf %68, %74 : vector<1x4x16x128xf32>
    %76 = vector.shape_cast %5 : vector<128xf32> to vector<1x1x1x128xf32>
    %77 = vector.broadcast %76 : vector<1x1x1x128xf32> to vector<1x4x16x128xf32>
    %78 = arith.addf %75, %77 : vector<1x4x16x128xf32>
    %cst_40 = arith.constant 0.000000e+00 : f32
    %cst_41 = arith.constant 6.000000e+00 : f32
    %79 = vector.broadcast %cst_40 : f32 to vector<1x4x16x128xf32>
    %80 = arith.maximumf %79, %78 : vector<1x4x16x128xf32>
    %81 = vector.broadcast %cst_41 : f32 to vector<1x4x16x128xf32>
    %82 = arith.minimumf %81, %80 : vector<1x4x16x128xf32>
    %83 = vector.shape_cast %82 : vector<1x4x16x128xf32> to vector<64x128xf32>
    %84 = arith.truncf %83 : vector<64x128xf32> to vector<64x128xbf16>
    %cst_42 = arith.constant dense<0.000000e+00> : vector<64x128xf32>
    %85 = tpu.matmul %84, %8, %cst_42 {dimension_numbers = #tpu.dot_dimension_numbers<[1], [0], [0], [1], [0, 0, 1, 1], [], []>} : vector<64x128xbf16>, vector<128x128xbf16>, vector<64x128xf32> -> vector<64x128xf32>
    %86 = vector.shape_cast %7 : vector<128xf32> to vector<1x128xf32>
    %87 = vector.broadcast %86 : vector<1x128xf32> to vector<64x128xf32>
    %88 = arith.addf %85, %87 : vector<64x128xf32>
    %89 = vector.shape_cast %88 : vector<64x128xf32> to vector<1x4x16x128xf32>
    %c0_43 = arith.constant 0 : index
    %c0_44 = arith.constant 0 : index
    %c0_45 = arith.constant 0 : index
    %c0_46 = arith.constant 0 : index
    %90 = vector.load %arg6[%c0_43, %c0_44, %c0_45, %c0_46] : memref<1x16x16x128xf32, #tpu.memory_space<vmem>>, vector<1x4x16x128xf32>
    tpu.vector_store %arg6[%c0_43, %c0_44, %c0_45, %c0_46], %89 {strides = array<i32>} : memref<1x16x16x128xf32, #tpu.memory_space<vmem>>, vector<1x4x16x128xf32>,
    %c0_47 = arith.constant 0 : index
    %c4_48 = arith.constant 4 : index
    %c0_49 = arith.constant 0 : index
    %c0_50 = arith.constant 0 : index
    %91 = vector.load %arg7[%c0_47, %c4_48, %c0_49, %c0_50] : memref<1x18x18x128xf32, #tpu.memory_space<vmem>>, vector<1x6x16x128xf32>
    %c0_51 = arith.constant 0 : index
    %c4_52 = arith.constant 4 : index
    %c1_53 = arith.constant 1 : index
    %c0_54 = arith.constant 0 : index
    %92 = vector.load %arg7[%c0_51, %c4_52, %c1_53, %c0_54] : memref<1x18x18x128xf32, #tpu.memory_space<vmem>>, vector<1x6x16x128xf32>
    %c0_55 = arith.constant 0 : index
    %c4_56 = arith.constant 4 : index
    %c2_57 = arith.constant 2 : index
    %c0_58 = arith.constant 0 : index
    %93 = vector.load %arg7[%c0_55, %c4_56, %c2_57, %c0_58] : memref<1x18x18x128xf32, #tpu.memory_space<vmem>>, vector<1x6x16x128xf32>
    %cst_59 = arith.constant 0.000000e+00 : f32
    %94 = vector.broadcast %cst_59 : f32 to vector<1x4x16x128xf32>
    %95 = vector.extract_strided_slice %91 {offsets = [0, 0, 0, 0], sizes = [1, 4, 16, 128], strides = [1, 1, 1, 1]} : vector<1x6x16x128xf32> to vector<1x4x16x128xf32>
    %c0_60 = arith.constant 0 : index
    %c0_61 = arith.constant 0 : index
    %96 = vector.load %arg2[%c0_60, %c0_61] : memref<9x128xf32, #tpu.memory_space<vmem>>, vector<1x128xf32>
    %97 = vector.shape_cast %96 : vector<1x128xf32> to vector<128xf32>
    %98 = vector.shape_cast %97 : vector<128xf32> to vector<1x1x1x128xf32>
    %99 = vector.broadcast %98 : vector<1x1x1x128xf32> to vector<1x4x16x128xf32>
    %100 = arith.mulf %95, %99 : vector<1x4x16x128xf32>
    %101 = arith.addf %94, %100 : vector<1x4x16x128xf32>
    %102 = vector.extract_strided_slice %92 {offsets = [0, 0, 0, 0], sizes = [1, 4, 16, 128], strides = [1, 1, 1, 1]} : vector<1x6x16x128xf32> to vector<1x4x16x128xf32>
    %c1_62 = arith.constant 1 : index
    %c0_63 = arith.constant 0 : index
    %103 = vector.load %arg2[%c1_62, %c0_63] : memref<9x128xf32, #tpu.memory_space<vmem>>, vector<1x128xf32>
    %104 = vector.shape_cast %103 : vector<1x128xf32> to vector<128xf32>
    %105 = vector.shape_cast %104 : vector<128xf32> to vector<1x1x1x128xf32>
    %106 = vector.broadcast %105 : vector<1x1x1x128xf32> to vector<1x4x16x128xf32>
    %107 = arith.mulf %102, %106 : vector<1x4x16x128xf32>
    %108 = arith.addf %101, %107 : vector<1x4x16x128xf32>
    %109 = vector.extract_strided_slice %93 {offsets = [0, 0, 0, 0], sizes = [1, 4, 16, 128], strides = [1, 1, 1, 1]} : vector<1x6x16x128xf32> to vector<1x4x16x128xf32>
    %c2_64 = arith.constant 2 : index
    %c0_65 = arith.constant 0 : index
    %110 = vector.load %arg2[%c2_64, %c0_65] : memref<9x128xf32, #tpu.memory_space<vmem>>, vector<1x128xf32>
    %111 = vector.shape_cast %110 : vector<1x128xf32> to vector<128xf32>
    %112 = vector.shape_cast %111 : vector<128xf32> to vector<1x1x1x128xf32>
    %113 = vector.broadcast %112 : vector<1x1x1x128xf32> to vector<1x4x16x128xf32>
    %114 = arith.mulf %109, %113 : vector<1x4x16x128xf32>
    %115 = arith.addf %108, %114 : vector<1x4x16x128xf32>
    %116 = vector.extract_strided_slice %91 {offsets = [0, 1, 0, 0], sizes = [1, 4, 16, 128], strides = [1, 1, 1, 1]} : vector<1x6x16x128xf32> to vector<1x4x16x128xf32>
    %c3_66 = arith.constant 3 : index
    %c0_67 = arith.constant 0 : index
    %117 = vector.load %arg2[%c3_66, %c0_67] : memref<9x128xf32, #tpu.memory_space<vmem>>, vector<1x128xf32>
    %118 = vector.shape_cast %117 : vector<1x128xf32> to vector<128xf32>
    %119 = vector.shape_cast %118 : vector<128xf32> to vector<1x1x1x128xf32>
    %120 = vector.broadcast %119 : vector<1x1x1x128xf32> to vector<1x4x16x128xf32>
    %121 = arith.mulf %116, %120 : vector<1x4x16x128xf32>
    %122 = arith.addf %115, %121 : vector<1x4x16x128xf32>
    %123 = vector.extract_strided_slice %92 {offsets = [0, 1, 0, 0], sizes = [1, 4, 16, 128], strides = [1, 1, 1, 1]} : vector<1x6x16x128xf32> to vector<1x4x16x128xf32>
    %c4_68 = arith.constant 4 : index
    %c0_69 = arith.constant 0 : index
    %124 = vector.load %arg2[%c4_68, %c0_69] : memref<9x128xf32, #tpu.memory_space<vmem>>, vector<1x128xf32>
    %125 = vector.shape_cast %124 : vector<1x128xf32> to vector<128xf32>
    %126 = vector.shape_cast %125 : vector<128xf32> to vector<1x1x1x128xf32>
    %127 = vector.broadcast %126 : vector<1x1x1x128xf32> to vector<1x4x16x128xf32>
    %128 = arith.mulf %123, %127 : vector<1x4x16x128xf32>
    %129 = arith.addf %122, %128 : vector<1x4x16x128xf32>
    %130 = vector.extract_strided_slice %93 {offsets = [0, 1, 0, 0], sizes = [1, 4, 16, 128], strides = [1, 1, 1, 1]} : vector<1x6x16x128xf32> to vector<1x4x16x128xf32>
    %c5_70 = arith.constant 5 : index
    %c0_71 = arith.constant 0 : index
    %131 = vector.load %arg2[%c5_70, %c0_71] : memref<9x128xf32, #tpu.memory_space<vmem>>, vector<1x128xf32>
    %132 = vector.shape_cast %131 : vector<1x128xf32> to vector<128xf32>
    %133 = vector.shape_cast %132 : vector<128xf32> to vector<1x1x1x128xf32>
    %134 = vector.broadcast %133 : vector<1x1x1x128xf32> to vector<1x4x16x128xf32>
    %135 = arith.mulf %130, %134 : vector<1x4x16x128xf32>
    %136 = arith.addf %129, %135 : vector<1x4x16x128xf32>
    %137 = vector.extract_strided_slice %91 {offsets = [0, 2, 0, 0], sizes = [1, 4, 16, 128], strides = [1, 1, 1, 1]} : vector<1x6x16x128xf32> to vector<1x4x16x128xf32>
    %c6_72 = arith.constant 6 : index
    %c0_73 = arith.constant 0 : index
    %138 = vector.load %arg2[%c6_72, %c0_73] : memref<9x128xf32, #tpu.memory_space<vmem>>, vector<1x128xf32>
    %139 = vector.shape_cast %138 : vector<1x128xf32> to vector<128xf32>
    %140 = vector.shape_cast %139 : vector<128xf32> to vector<1x1x1x128xf32>
    %141 = vector.broadcast %140 : vector<1x1x1x128xf32> to vector<1x4x16x128xf32>
    %142 = arith.mulf %137, %141 : vector<1x4x16x128xf32>
    %143 = arith.addf %136, %142 : vector<1x4x16x128xf32>
    %144 = vector.extract_strided_slice %92 {offsets = [0, 2, 0, 0], sizes = [1, 4, 16, 128], strides = [1, 1, 1, 1]} : vector<1x6x16x128xf32> to vector<1x4x16x128xf32>
    %c7_74 = arith.constant 7 : index
    %c0_75 = arith.constant 0 : index
    %145 = vector.load %arg2[%c7_74, %c0_75] : memref<9x128xf32, #tpu.memory_space<vmem>>, vector<1x128xf32>
    %146 = vector.shape_cast %145 : vector<1x128xf32> to vector<128xf32>
    %147 = vector.shape_cast %146 : vector<128xf32> to vector<1x1x1x128xf32>
    %148 = vector.broadcast %147 : vector<1x1x1x128xf32> to vector<1x4x16x128xf32>
    %149 = arith.mulf %144, %148 : vector<1x4x16x128xf32>
    %150 = arith.addf %143, %149 : vector<1x4x16x128xf32>
    %151 = vector.extract_strided_slice %93 {offsets = [0, 2, 0, 0], sizes = [1, 4, 16, 128], strides = [1, 1, 1, 1]} : vector<1x6x16x128xf32> to vector<1x4x16x128xf32>
    %c8_76 = arith.constant 8 : index
    %c0_77 = arith.constant 0 : index
    %152 = vector.load %arg2[%c8_76, %c0_77] : memref<9x128xf32, #tpu.memory_space<vmem>>, vector<1x128xf32>
    %153 = vector.shape_cast %152 : vector<1x128xf32> to vector<128xf32>
    %154 = vector.shape_cast %153 : vector<128xf32> to vector<1x1x1x128xf32>
    %155 = vector.broadcast %154 : vector<1x1x1x128xf32> to vector<1x4x16x128xf32>
    %156 = arith.mulf %151, %155 : vector<1x4x16x128xf32>
    %157 = arith.addf %150, %156 : vector<1x4x16x128xf32>
    %158 = vector.shape_cast %5 : vector<128xf32> to vector<1x1x1x128xf32>
    %159 = vector.broadcast %158 : vector<1x1x1x128xf32> to vector<1x4x16x128xf32>
    %160 = arith.addf %157, %159 : vector<1x4x16x128xf32>
    %cst_78 = arith.constant 0.000000e+00 : f32
    %cst_79 = arith.constant 6.000000e+00 : f32
    %161 = vector.broadcast %cst_78 : f32 to vector<1x4x16x128xf32>
    %162 = arith.maximumf %161, %160 : vector<1x4x16x128xf32>
    %163 = vector.broadcast %cst_79 : f32 to vector<1x4x16x128xf32>
    %164 = arith.minimumf %163, %162 : vector<1x4x16x128xf32>
    %165 = vector.shape_cast %164 : vector<1x4x16x128xf32> to vector<64x128xf32>
    %166 = arith.truncf %165 : vector<64x128xf32> to vector<64x128xbf16>
    %cst_80 = arith.constant dense<0.000000e+00> : vector<64x128xf32>
    %167 = tpu.matmul %166, %8, %cst_80 {dimension_numbers = #tpu.dot_dimension_numbers<[1], [0], [0], [1], [0, 0, 1, 1], [], []>} : vector<64x128xbf16>, vector<128x128xbf16>, vector<64x128xf32> -> vector<64x128xf32>
    %168 = vector.shape_cast %7 : vector<128xf32> to vector<1x128xf32>
    %169 = vector.broadcast %168 : vector<1x128xf32> to vector<64x128xf32>
    %170 = arith.addf %167, %169 : vector<64x128xf32>
    %171 = vector.shape_cast %170 : vector<64x128xf32> to vector<1x4x16x128xf32>
    %c0_81 = arith.constant 0 : index
    %c4_82 = arith.constant 4 : index
    %c0_83 = arith.constant 0 : index
    %c0_84 = arith.constant 0 : index
    %172 = vector.load %arg6[%c0_81, %c4_82, %c0_83, %c0_84] : memref<1x16x16x128xf32, #tpu.memory_space<vmem>>, vector<1x4x16x128xf32>
    tpu.vector_store %arg6[%c0_81, %c4_82, %c0_83, %c0_84], %171 {strides = array<i32>} : memref<1x16x16x128xf32, #tpu.memory_space<vmem>>, vector<1x4x16x128xf32>,
    %c0_85 = arith.constant 0 : index
    %c8_86 = arith.constant 8 : index
    %c0_87 = arith.constant 0 : index
    %c0_88 = arith.constant 0 : index
    %173 = vector.load %arg7[%c0_85, %c8_86, %c0_87, %c0_88] : memref<1x18x18x128xf32, #tpu.memory_space<vmem>>, vector<1x6x16x128xf32>
    %c0_89 = arith.constant 0 : index
    %c8_90 = arith.constant 8 : index
    %c1_91 = arith.constant 1 : index
    %c0_92 = arith.constant 0 : index
    %174 = vector.load %arg7[%c0_89, %c8_90, %c1_91, %c0_92] : memref<1x18x18x128xf32, #tpu.memory_space<vmem>>, vector<1x6x16x128xf32>
    %c0_93 = arith.constant 0 : index
    %c8_94 = arith.constant 8 : index
    %c2_95 = arith.constant 2 : index
    %c0_96 = arith.constant 0 : index
    %175 = vector.load %arg7[%c0_93, %c8_94, %c2_95, %c0_96] : memref<1x18x18x128xf32, #tpu.memory_space<vmem>>, vector<1x6x16x128xf32>
    %cst_97 = arith.constant 0.000000e+00 : f32
    %176 = vector.broadcast %cst_97 : f32 to vector<1x4x16x128xf32>
    %177 = vector.extract_strided_slice %173 {offsets = [0, 0, 0, 0], sizes = [1, 4, 16, 128], strides = [1, 1, 1, 1]} : vector<1x6x16x128xf32> to vector<1x4x16x128xf32>
    %c0_98 = arith.constant 0 : index
    %c0_99 = arith.constant 0 : index
    %178 = vector.load %arg2[%c0_98, %c0_99] : memref<9x128xf32, #tpu.memory_space<vmem>>, vector<1x128xf32>
    %179 = vector.shape_cast %178 : vector<1x128xf32> to vector<128xf32>
    %180 = vector.shape_cast %179 : vector<128xf32> to vector<1x1x1x128xf32>
    %181 = vector.broadcast %180 : vector<1x1x1x128xf32> to vector<1x4x16x128xf32>
    %182 = arith.mulf %177, %181 : vector<1x4x16x128xf32>
    %183 = arith.addf %176, %182 : vector<1x4x16x128xf32>
    %184 = vector.extract_strided_slice %174 {offsets = [0, 0, 0, 0], sizes = [1, 4, 16, 128], strides = [1, 1, 1, 1]} : vector<1x6x16x128xf32> to vector<1x4x16x128xf32>
    %c1_100 = arith.constant 1 : index
    %c0_101 = arith.constant 0 : index
    %185 = vector.load %arg2[%c1_100, %c0_101] : memref<9x128xf32, #tpu.memory_space<vmem>>, vector<1x128xf32>
    %186 = vector.shape_cast %185 : vector<1x128xf32> to vector<128xf32>
    %187 = vector.shape_cast %186 : vector<128xf32> to vector<1x1x1x128xf32>
    %188 = vector.broadcast %187 : vector<1x1x1x128xf32> to vector<1x4x16x128xf32>
    %189 = arith.mulf %184, %188 : vector<1x4x16x128xf32>
    %190 = arith.addf %183, %189 : vector<1x4x16x128xf32>
    %191 = vector.extract_strided_slice %175 {offsets = [0, 0, 0, 0], sizes = [1, 4, 16, 128], strides = [1, 1, 1, 1]} : vector<1x6x16x128xf32> to vector<1x4x16x128xf32>
    %c2_102 = arith.constant 2 : index
    %c0_103 = arith.constant 0 : index
    %192 = vector.load %arg2[%c2_102, %c0_103] : memref<9x128xf32, #tpu.memory_space<vmem>>, vector<1x128xf32>
    %193 = vector.shape_cast %192 : vector<1x128xf32> to vector<128xf32>
    %194 = vector.shape_cast %193 : vector<128xf32> to vector<1x1x1x128xf32>
    %195 = vector.broadcast %194 : vector<1x1x1x128xf32> to vector<1x4x16x128xf32>
    %196 = arith.mulf %191, %195 : vector<1x4x16x128xf32>
    %197 = arith.addf %190, %196 : vector<1x4x16x128xf32>
    %198 = vector.extract_strided_slice %173 {offsets = [0, 1, 0, 0], sizes = [1, 4, 16, 128], strides = [1, 1, 1, 1]} : vector<1x6x16x128xf32> to vector<1x4x16x128xf32>
    %c3_104 = arith.constant 3 : index
    %c0_105 = arith.constant 0 : index
    %199 = vector.load %arg2[%c3_104, %c0_105] : memref<9x128xf32, #tpu.memory_space<vmem>>, vector<1x128xf32>
    %200 = vector.shape_cast %199 : vector<1x128xf32> to vector<128xf32>
    %201 = vector.shape_cast %200 : vector<128xf32> to vector<1x1x1x128xf32>
    %202 = vector.broadcast %201 : vector<1x1x1x128xf32> to vector<1x4x16x128xf32>
    %203 = arith.mulf %198, %202 : vector<1x4x16x128xf32>
    %204 = arith.addf %197, %203 : vector<1x4x16x128xf32>
    %205 = vector.extract_strided_slice %174 {offsets = [0, 1, 0, 0], sizes = [1, 4, 16, 128], strides = [1, 1, 1, 1]} : vector<1x6x16x128xf32> to vector<1x4x16x128xf32>
    %c4_106 = arith.constant 4 : index
    %c0_107 = arith.constant 0 : index
    %206 = vector.load %arg2[%c4_106, %c0_107] : memref<9x128xf32, #tpu.memory_space<vmem>>, vector<1x128xf32>
    %207 = vector.shape_cast %206 : vector<1x128xf32> to vector<128xf32>
    %208 = vector.shape_cast %207 : vector<128xf32> to vector<1x1x1x128xf32>
    %209 = vector.broadcast %208 : vector<1x1x1x128xf32> to vector<1x4x16x128xf32>
    %210 = arith.mulf %205, %209 : vector<1x4x16x128xf32>
    %211 = arith.addf %204, %210 : vector<1x4x16x128xf32>
    %212 = vector.extract_strided_slice %175 {offsets = [0, 1, 0, 0], sizes = [1, 4, 16, 128], strides = [1, 1, 1, 1]} : vector<1x6x16x128xf32> to vector<1x4x16x128xf32>
    %c5_108 = arith.constant 5 : index
    %c0_109 = arith.constant 0 : index
    %213 = vector.load %arg2[%c5_108, %c0_109] : memref<9x128xf32, #tpu.memory_space<vmem>>, vector<1x128xf32>
    %214 = vector.shape_cast %213 : vector<1x128xf32> to vector<128xf32>
    %215 = vector.shape_cast %214 : vector<128xf32> to vector<1x1x1x128xf32>
    %216 = vector.broadcast %215 : vector<1x1x1x128xf32> to vector<1x4x16x128xf32>
    %217 = arith.mulf %212, %216 : vector<1x4x16x128xf32>
    %218 = arith.addf %211, %217 : vector<1x4x16x128xf32>
    %219 = vector.extract_strided_slice %173 {offsets = [0, 2, 0, 0], sizes = [1, 4, 16, 128], strides = [1, 1, 1, 1]} : vector<1x6x16x128xf32> to vector<1x4x16x128xf32>
    %c6_110 = arith.constant 6 : index
    %c0_111 = arith.constant 0 : index
    %220 = vector.load %arg2[%c6_110, %c0_111] : memref<9x128xf32, #tpu.memory_space<vmem>>, vector<1x128xf32>
    %221 = vector.shape_cast %220 : vector<1x128xf32> to vector<128xf32>
    %222 = vector.shape_cast %221 : vector<128xf32> to vector<1x1x1x128xf32>
    %223 = vector.broadcast %222 : vector<1x1x1x128xf32> to vector<1x4x16x128xf32>
    %224 = arith.mulf %219, %223 : vector<1x4x16x128xf32>
    %225 = arith.addf %218, %224 : vector<1x4x16x128xf32>
    %226 = vector.extract_strided_slice %174 {offsets = [0, 2, 0, 0], sizes = [1, 4, 16, 128], strides = [1, 1, 1, 1]} : vector<1x6x16x128xf32> to vector<1x4x16x128xf32>
    %c7_112 = arith.constant 7 : index
    %c0_113 = arith.constant 0 : index
    %227 = vector.load %arg2[%c7_112, %c0_113] : memref<9x128xf32, #tpu.memory_space<vmem>>, vector<1x128xf32>
    %228 = vector.shape_cast %227 : vector<1x128xf32> to vector<128xf32>
    %229 = vector.shape_cast %228 : vector<128xf32> to vector<1x1x1x128xf32>
    %230 = vector.broadcast %229 : vector<1x1x1x128xf32> to vector<1x4x16x128xf32>
    %231 = arith.mulf %226, %230 : vector<1x4x16x128xf32>
    %232 = arith.addf %225, %231 : vector<1x4x16x128xf32>
    %233 = vector.extract_strided_slice %175 {offsets = [0, 2, 0, 0], sizes = [1, 4, 16, 128], strides = [1, 1, 1, 1]} : vector<1x6x16x128xf32> to vector<1x4x16x128xf32>
    %c8_114 = arith.constant 8 : index
    %c0_115 = arith.constant 0 : index
    %234 = vector.load %arg2[%c8_114, %c0_115] : memref<9x128xf32, #tpu.memory_space<vmem>>, vector<1x128xf32>
    %235 = vector.shape_cast %234 : vector<1x128xf32> to vector<128xf32>
    %236 = vector.shape_cast %235 : vector<128xf32> to vector<1x1x1x128xf32>
    %237 = vector.broadcast %236 : vector<1x1x1x128xf32> to vector<1x4x16x128xf32>
    %238 = arith.mulf %233, %237 : vector<1x4x16x128xf32>
    %239 = arith.addf %232, %238 : vector<1x4x16x128xf32>
    %240 = vector.shape_cast %5 : vector<128xf32> to vector<1x1x1x128xf32>
    %241 = vector.broadcast %240 : vector<1x1x1x128xf32> to vector<1x4x16x128xf32>
    %242 = arith.addf %239, %241 : vector<1x4x16x128xf32>
    %cst_116 = arith.constant 0.000000e+00 : f32
    %cst_117 = arith.constant 6.000000e+00 : f32
    %243 = vector.broadcast %cst_116 : f32 to vector<1x4x16x128xf32>
    %244 = arith.maximumf %243, %242 : vector<1x4x16x128xf32>
    %245 = vector.broadcast %cst_117 : f32 to vector<1x4x16x128xf32>
    %246 = arith.minimumf %245, %244 : vector<1x4x16x128xf32>
    %247 = vector.shape_cast %246 : vector<1x4x16x128xf32> to vector<64x128xf32>
    %248 = arith.truncf %247 : vector<64x128xf32> to vector<64x128xbf16>
    %cst_118 = arith.constant dense<0.000000e+00> : vector<64x128xf32>
    %249 = tpu.matmul %248, %8, %cst_118 {dimension_numbers = #tpu.dot_dimension_numbers<[1], [0], [0], [1], [0, 0, 1, 1], [], []>} : vector<64x128xbf16>, vector<128x128xbf16>, vector<64x128xf32> -> vector<64x128xf32>
    %250 = vector.shape_cast %7 : vector<128xf32> to vector<1x128xf32>
    %251 = vector.broadcast %250 : vector<1x128xf32> to vector<64x128xf32>
    %252 = arith.addf %249, %251 : vector<64x128xf32>
    %253 = vector.shape_cast %252 : vector<64x128xf32> to vector<1x4x16x128xf32>
    %c0_119 = arith.constant 0 : index
    %c8_120 = arith.constant 8 : index
    %c0_121 = arith.constant 0 : index
    %c0_122 = arith.constant 0 : index
    %254 = vector.load %arg6[%c0_119, %c8_120, %c0_121, %c0_122] : memref<1x16x16x128xf32, #tpu.memory_space<vmem>>, vector<1x4x16x128xf32>
    tpu.vector_store %arg6[%c0_119, %c8_120, %c0_121, %c0_122], %253 {strides = array<i32>} : memref<1x16x16x128xf32, #tpu.memory_space<vmem>>, vector<1x4x16x128xf32>,
    %c0_123 = arith.constant 0 : index
    %c12 = arith.constant 12 : index
    %c0_124 = arith.constant 0 : index
    %c0_125 = arith.constant 0 : index
    %255 = vector.load %arg7[%c0_123, %c12, %c0_124, %c0_125] : memref<1x18x18x128xf32, #tpu.memory_space<vmem>>, vector<1x6x16x128xf32>
    %c0_126 = arith.constant 0 : index
    %c12_127 = arith.constant 12 : index
    %c1_128 = arith.constant 1 : index
    %c0_129 = arith.constant 0 : index
    %256 = vector.load %arg7[%c0_126, %c12_127, %c1_128, %c0_129] : memref<1x18x18x128xf32, #tpu.memory_space<vmem>>, vector<1x6x16x128xf32>
    %c0_130 = arith.constant 0 : index
    %c12_131 = arith.constant 12 : index
    %c2_132 = arith.constant 2 : index
    %c0_133 = arith.constant 0 : index
    %257 = vector.load %arg7[%c0_130, %c12_131, %c2_132, %c0_133] : memref<1x18x18x128xf32, #tpu.memory_space<vmem>>, vector<1x6x16x128xf32>
    %cst_134 = arith.constant 0.000000e+00 : f32
    %258 = vector.broadcast %cst_134 : f32 to vector<1x4x16x128xf32>
    %259 = vector.extract_strided_slice %255 {offsets = [0, 0, 0, 0], sizes = [1, 4, 16, 128], strides = [1, 1, 1, 1]} : vector<1x6x16x128xf32> to vector<1x4x16x128xf32>
    %c0_135 = arith.constant 0 : index
    %c0_136 = arith.constant 0 : index
    %260 = vector.load %arg2[%c0_135, %c0_136] : memref<9x128xf32, #tpu.memory_space<vmem>>, vector<1x128xf32>
    %261 = vector.shape_cast %260 : vector<1x128xf32> to vector<128xf32>
    %262 = vector.shape_cast %261 : vector<128xf32> to vector<1x1x1x128xf32>
    %263 = vector.broadcast %262 : vector<1x1x1x128xf32> to vector<1x4x16x128xf32>
    %264 = arith.mulf %259, %263 : vector<1x4x16x128xf32>
    %265 = arith.addf %258, %264 : vector<1x4x16x128xf32>
    %266 = vector.extract_strided_slice %256 {offsets = [0, 0, 0, 0], sizes = [1, 4, 16, 128], strides = [1, 1, 1, 1]} : vector<1x6x16x128xf32> to vector<1x4x16x128xf32>
    %c1_137 = arith.constant 1 : index
    %c0_138 = arith.constant 0 : index
    %267 = vector.load %arg2[%c1_137, %c0_138] : memref<9x128xf32, #tpu.memory_space<vmem>>, vector<1x128xf32>
    %268 = vector.shape_cast %267 : vector<1x128xf32> to vector<128xf32>
    %269 = vector.shape_cast %268 : vector<128xf32> to vector<1x1x1x128xf32>
    %270 = vector.broadcast %269 : vector<1x1x1x128xf32> to vector<1x4x16x128xf32>
    %271 = arith.mulf %266, %270 : vector<1x4x16x128xf32>
    %272 = arith.addf %265, %271 : vector<1x4x16x128xf32>
    %273 = vector.extract_strided_slice %257 {offsets = [0, 0, 0, 0], sizes = [1, 4, 16, 128], strides = [1, 1, 1, 1]} : vector<1x6x16x128xf32> to vector<1x4x16x128xf32>
    %c2_139 = arith.constant 2 : index
    %c0_140 = arith.constant 0 : index
    %274 = vector.load %arg2[%c2_139, %c0_140] : memref<9x128xf32, #tpu.memory_space<vmem>>, vector<1x128xf32>
    %275 = vector.shape_cast %274 : vector<1x128xf32> to vector<128xf32>
    %276 = vector.shape_cast %275 : vector<128xf32> to vector<1x1x1x128xf32>
    %277 = vector.broadcast %276 : vector<1x1x1x128xf32> to vector<1x4x16x128xf32>
    %278 = arith.mulf %273, %277 : vector<1x4x16x128xf32>
    %279 = arith.addf %272, %278 : vector<1x4x16x128xf32>
    %280 = vector.extract_strided_slice %255 {offsets = [0, 1, 0, 0], sizes = [1, 4, 16, 128], strides = [1, 1, 1, 1]} : vector<1x6x16x128xf32> to vector<1x4x16x128xf32>
    %c3_141 = arith.constant 3 : index
    %c0_142 = arith.constant 0 : index
    %281 = vector.load %arg2[%c3_141, %c0_142] : memref<9x128xf32, #tpu.memory_space<vmem>>, vector<1x128xf32>
    %282 = vector.shape_cast %281 : vector<1x128xf32> to vector<128xf32>
    %283 = vector.shape_cast %282 : vector<128xf32> to vector<1x1x1x128xf32>
    %284 = vector.broadcast %283 : vector<1x1x1x128xf32> to vector<1x4x16x128xf32>
    %285 = arith.mulf %280, %284 : vector<1x4x16x128xf32>
    %286 = arith.addf %279, %285 : vector<1x4x16x128xf32>
    %287 = vector.extract_strided_slice %256 {offsets = [0, 1, 0, 0], sizes = [1, 4, 16, 128], strides = [1, 1, 1, 1]} : vector<1x6x16x128xf32> to vector<1x4x16x128xf32>
    %c4_143 = arith.constant 4 : index
    %c0_144 = arith.constant 0 : index
    %288 = vector.load %arg2[%c4_143, %c0_144] : memref<9x128xf32, #tpu.memory_space<vmem>>, vector<1x128xf32>
    %289 = vector.shape_cast %288 : vector<1x128xf32> to vector<128xf32>
    %290 = vector.shape_cast %289 : vector<128xf32> to vector<1x1x1x128xf32>
    %291 = vector.broadcast %290 : vector<1x1x1x128xf32> to vector<1x4x16x128xf32>
    %292 = arith.mulf %287, %291 : vector<1x4x16x128xf32>
    %293 = arith.addf %286, %292 : vector<1x4x16x128xf32>
    %294 = vector.extract_strided_slice %257 {offsets = [0, 1, 0, 0], sizes = [1, 4, 16, 128], strides = [1, 1, 1, 1]} : vector<1x6x16x128xf32> to vector<1x4x16x128xf32>
    %c5_145 = arith.constant 5 : index
    %c0_146 = arith.constant 0 : index
    %295 = vector.load %arg2[%c5_145, %c0_146] : memref<9x128xf32, #tpu.memory_space<vmem>>, vector<1x128xf32>
    %296 = vector.shape_cast %295 : vector<1x128xf32> to vector<128xf32>
    %297 = vector.shape_cast %296 : vector<128xf32> to vector<1x1x1x128xf32>
    %298 = vector.broadcast %297 : vector<1x1x1x128xf32> to vector<1x4x16x128xf32>
    %299 = arith.mulf %294, %298 : vector<1x4x16x128xf32>
    %300 = arith.addf %293, %299 : vector<1x4x16x128xf32>
    %301 = vector.extract_strided_slice %255 {offsets = [0, 2, 0, 0], sizes = [1, 4, 16, 128], strides = [1, 1, 1, 1]} : vector<1x6x16x128xf32> to vector<1x4x16x128xf32>
    %c6_147 = arith.constant 6 : index
    %c0_148 = arith.constant 0 : index
    %302 = vector.load %arg2[%c6_147, %c0_148] : memref<9x128xf32, #tpu.memory_space<vmem>>, vector<1x128xf32>
    %303 = vector.shape_cast %302 : vector<1x128xf32> to vector<128xf32>
    %304 = vector.shape_cast %303 : vector<128xf32> to vector<1x1x1x128xf32>
    %305 = vector.broadcast %304 : vector<1x1x1x128xf32> to vector<1x4x16x128xf32>
    %306 = arith.mulf %301, %305 : vector<1x4x16x128xf32>
    %307 = arith.addf %300, %306 : vector<1x4x16x128xf32>
    %308 = vector.extract_strided_slice %256 {offsets = [0, 2, 0, 0], sizes = [1, 4, 16, 128], strides = [1, 1, 1, 1]} : vector<1x6x16x128xf32> to vector<1x4x16x128xf32>
    %c7_149 = arith.constant 7 : index
    %c0_150 = arith.constant 0 : index
    %309 = vector.load %arg2[%c7_149, %c0_150] : memref<9x128xf32, #tpu.memory_space<vmem>>, vector<1x128xf32>
    %310 = vector.shape_cast %309 : vector<1x128xf32> to vector<128xf32>
    %311 = vector.shape_cast %310 : vector<128xf32> to vector<1x1x1x128xf32>
    %312 = vector.broadcast %311 : vector<1x1x1x128xf32> to vector<1x4x16x128xf32>
    %313 = arith.mulf %308, %312 : vector<1x4x16x128xf32>
    %314 = arith.addf %307, %313 : vector<1x4x16x128xf32>
    %315 = vector.extract_strided_slice %257 {offsets = [0, 2, 0, 0], sizes = [1, 4, 16, 128], strides = [1, 1, 1, 1]} : vector<1x6x16x128xf32> to vector<1x4x16x128xf32>
    %c8_151 = arith.constant 8 : index
    %c0_152 = arith.constant 0 : index
    %316 = vector.load %arg2[%c8_151, %c0_152] : memref<9x128xf32, #tpu.memory_space<vmem>>, vector<1x128xf32>
    %317 = vector.shape_cast %316 : vector<1x128xf32> to vector<128xf32>
    %318 = vector.shape_cast %317 : vector<128xf32> to vector<1x1x1x128xf32>
    %319 = vector.broadcast %318 : vector<1x1x1x128xf32> to vector<1x4x16x128xf32>
    %320 = arith.mulf %315, %319 : vector<1x4x16x128xf32>
    %321 = arith.addf %314, %320 : vector<1x4x16x128xf32>
    %322 = vector.shape_cast %5 : vector<128xf32> to vector<1x1x1x128xf32>
    %323 = vector.broadcast %322 : vector<1x1x1x128xf32> to vector<1x4x16x128xf32>
    %324 = arith.addf %321, %323 : vector<1x4x16x128xf32>
    %cst_153 = arith.constant 0.000000e+00 : f32
    %cst_154 = arith.constant 6.000000e+00 : f32
    %325 = vector.broadcast %cst_153 : f32 to vector<1x4x16x128xf32>
    %326 = arith.maximumf %325, %324 : vector<1x4x16x128xf32>
    %327 = vector.broadcast %cst_154 : f32 to vector<1x4x16x128xf32>
    %328 = arith.minimumf %327, %326 : vector<1x4x16x128xf32>
    %329 = vector.shape_cast %328 : vector<1x4x16x128xf32> to vector<64x128xf32>
    %330 = arith.truncf %329 : vector<64x128xf32> to vector<64x128xbf16>
    %cst_155 = arith.constant dense<0.000000e+00> : vector<64x128xf32>
    %331 = tpu.matmul %330, %8, %cst_155 {dimension_numbers = #tpu.dot_dimension_numbers<[1], [0], [0], [1], [0, 0, 1, 1], [], []>} : vector<64x128xbf16>, vector<128x128xbf16>, vector<64x128xf32> -> vector<64x128xf32>
    %332 = vector.shape_cast %7 : vector<128xf32> to vector<1x128xf32>
    %333 = vector.broadcast %332 : vector<1x128xf32> to vector<64x128xf32>
    %334 = arith.addf %331, %333 : vector<64x128xf32>
    %335 = vector.shape_cast %334 : vector<64x128xf32> to vector<1x4x16x128xf32>
    %c0_156 = arith.constant 0 : index
    %c12_157 = arith.constant 12 : index
    %c0_158 = arith.constant 0 : index
    %c0_159 = arith.constant 0 : index
    %336 = vector.load %arg6[%c0_156, %c12_157, %c0_158, %c0_159] : memref<1x16x16x128xf32, #tpu.memory_space<vmem>>, vector<1x4x16x128xf32>
    tpu.vector_store %arg6[%c0_156, %c12_157, %c0_158, %c0_159], %335 {strides = array<i32>} : memref<1x16x16x128xf32, #tpu.memory_space<vmem>>, vector<1x4x16x128xf32>,
    return
  }
  func.func @transform_0(%arg0: i32) -> (i32, i32, i32, i32) {
    %c0_i32 = arith.constant 0 : i32
    %c0_i32_0 = arith.constant 0 : i32
    %c0_i32_1 = arith.constant 0 : i32
    %c0_i32_2 = arith.constant 0 : i32
    return %arg0, %c0_i32, %c0_i32_0, %c0_i32_1 : i32, i32, i32, i32
  }
  func.func @transform_1(%arg0: i32) -> (i32, i32) {
    %c0_i32 = arith.constant 0 : i32
    %c0_i32_0 = arith.constant 0 : i32
    %c0_i32_1 = arith.constant 0 : i32
    return %c0_i32, %c0_i32_0 : i32, i32
  }
  func.func @transform_2(%arg0: i32) -> (i32, i32) {
    %c0_i32 = arith.constant 0 : i32
    %c0_i32_0 = arith.constant 0 : i32
    %c0_i32_1 = arith.constant 0 : i32
    return %c0_i32, %c0_i32_0 : i32, i32
  }
  func.func @transform_3(%arg0: i32) -> (i32, i32) {
    %c0_i32 = arith.constant 0 : i32
    %c0_i32_0 = arith.constant 0 : i32
    %c0_i32_1 = arith.constant 0 : i32
    return %c0_i32, %c0_i32_0 : i32, i32
  }
  func.func @transform_4(%arg0: i32) -> (i32, i32) {
    %c0_i32 = arith.constant 0 : i32
    %c0_i32_0 = arith.constant 0 : i32
    %c0_i32_1 = arith.constant 0 : i32
    return %c0_i32, %c0_i32_0 : i32, i32
  }
  func.func @transform_5(%arg0: i32) -> (i32, i32, i32, i32) {
    %c0_i32 = arith.constant 0 : i32
    %c0_i32_0 = arith.constant 0 : i32
    %c0_i32_1 = arith.constant 0 : i32
    %c0_i32_2 = arith.constant 0 : i32
    return %arg0, %c0_i32, %c0_i32_0, %c0_i32_1 : i32, i32, i32, i32
  }
}

</mosaic_0001>

<llo_original>
// kernel: tpu_custom_call.1
$region0: #{tpu_custom_call.1}
  #allocation0 [shape = 'u32[]', space=smem, size = 0x4, offset = 0x4, fixed_abs, tag = 'smem constant byte address 0x4 - core index']
  #allocation1 [shape = 'u32[72,128]{1,0:T(1,128)}', space=vmem, size = 0x9000, scoped, tag = 'internal scratch']
  #allocation2 [shape = 'f32[1,18,18,128]{3,2,1,0:T(8,128)}', space=vmem, size = 0x36000, scoped, tag = 'scratch operand']
  %s0 = inlined_call_operand.hbm [shape: f32[2,16,16,128], index: 0, kind: input, shape index: {}]
  %s1 = inlined_call_operand.hbm [shape: f32[9,128], index: 1, kind: input, shape index: {}]
  %s2 = inlined_call_operand.vmem [shape: f32[1,128], index: 2, kind: input, shape index: {}]
  %s3 = inlined_call_operand.hbm [shape: bf16[128,128], index: 3, kind: input, shape index: {}]
  %s4 = inlined_call_operand.vmem [shape: f32[1,128], index: 4, kind: input, shape index: {}]
  %s5 = inlined_call_operand.hbm [shape: f32[2,16,16,128], index: 5, kind: output, shape index: {}]
  %s6 = sld [smem:[#allocation0]]
  $region65: #{tpu_custom_call.1} parent=0
    _
  %s8 = ssub.s32 1, %s6
  %s9 = scalar_select 0, %s8, %s6
  $region1: #{tpu_custom_call.1} parent=0
    #allocation3 [shape = 'u8[262144]{0}', space=vmem, size = 0x40000, scoped, tag = 'input window, operand 0']
    #allocation4 [shape = 's32[2]{0}', space=sflag, size = 0x8, scoped, tag = 'scoped memory for tpu_custom_call.1']
    #allocation5 [shape = 's32[2]{0}', space=sflag, size = 0x8, scoped, tag = 'scoped memory for tpu_custom_call.1']
    #allocation6 [shape = 'u8[8192]{0}', space=vmem, size = 0x2000, scoped, tag = 'input window, operand 1, single buffered']
    #allocation7 [shape = 's32[1]{0}', space=sflag, size = 0x4, scoped, tag = 'scoped memory for tpu_custom_call.1']
    #allocation8 [shape = 'u8[32768]{0}', space=vmem, size = 0x8000, scoped, tag = 'input window, operand 3, single buffered']
    #allocation9 [shape = 'u8[262144]{0}', space=vmem, size = 0x40000, scoped, tag = 'output window, operand 0']
    %10 = vsyncpa [#allocation4], 0
    %s11 = scalar_lea.sflag [#allocation4], 1
    %12 = vsyncpa %s11, 0
    %13 = vsyncpa [#allocation7], 0
    %14 = vsyncpa [#allocation5], 0
    %s15 = scalar_lea.sflag [#allocation5], 1
    %16 = vsyncpa %s15, 0
    loop: start=0, step=1, limit=4
    $region2: #{tpu_custom_call.1} parent=1 // loop_pre_header
      _
    $region3: #{tpu_custom_call.1} parent=1 // loop_header
      %s18 = sphi 0, %s22
      %p19 = scmp.ge.s32.totalorder %s18, 4
      %s28 = sphi 0, %s30
      %s31 = sphi 0, %s28
      %s32 = sphi 0, %s31
      %s48 = sphi 0, %s32
      %s52 = sphi 0, %s52
      %s54 = sphi 0, %s52
      %s55 = sphi 0, %s54
      %s69 = sphi 0, %s55
      %s73 = sphi 0, %s73
      %s75 = sphi 0, %s73
      %s76 = sphi 0, %s75
      %s90 = sphi 0, %s76
      %s94 = sphi 0, %s94
      %s96 = sphi 0, %s94
      %s97 = sphi 0, %s96
      %s111 = sphi 0, %s97
      %s115 = sphi 0, %s115
      %s117 = sphi 0, %s115
      %s118 = sphi 0, %s117
      %s132 = sphi 0, %s118
      %s138 = sphi 0, %s140
      %s141 = sphi 0, %s138
      %s142 = sphi 0, %s141
      %s158 = sphi 0, %s142
    $region4: #{tpu_custom_call.1} parent=1 // loop_header_branch
      %21 = sbr.rel (%p19) target = $region8
    $region5: #{tpu_custom_call.1} parent=1 // loop_body
      %s23 = ssub.s32 %s18, 1
      %s24 = ssub.s32 %s18, 2
      %s25 = sadd.s32 %s18, 1
      %s26 = ssub.s32 %s18, %s25
      %p27 = scmp.eq.s32.totalorder %s26, 0
      %s29 = sadd.s32 %s28, 1
      %s30 = scalar_select %p27, %s28, %s29
      %p33 = pneg %p27
      %p34 = scmp.eq.s32.totalorder %s18, 1
      %p35 = por %p33, %p34
      %p36 = scmp.ne.s32.totalorder %s28, %s31
      %p37 = scmp.eq.s32.totalorder %s18, 0
      %p38 = por %p36, %p37
      %p39 = scmp.ne.s32.totalorder %s28, %s31
      %p40 = scmp.eq.s32.totalorder %s23, 1
      %p41 = por %p39, %p40
      %p42 = scmp.ne.s32.totalorder %s31, %s32
      %p43 = scmp.eq.s32.totalorder %s23, 0
      %p44 = por %p42, %p43
      %p45 = scmp.ne.s32.totalorder %s31, %s32
      %p46 = scmp.eq.s32.totalorder %s24, 1
      %p47 = por %p45, %p46
      %p49 = scmp.ne.s32.totalorder %s32, %s48
      %p50 = scmp.eq.s32.totalorder %s24, 0
      %p51 = por %p49, %p50
      %s53 = sadd.s32 %s52, 1
      %p56 = scmp.eq.s32.totalorder %s18, 1
      %p57 = scmp.ne.s32.totalorder %s52, %s54
      %p58 = scmp.eq.s32.totalorder %s18, 0
      %p59 = por %p57, %p58
      %p60 = scmp.ne.s32.totalorder %s52, %s54
      %p61 = scmp.eq.s32.totalorder %s23, 1
      %p62 = por %p60, %p61
      %p63 = scmp.ne.s32.totalorder %s54, %s55
      %p64 = scmp.eq.s32.totalorder %s23, 0
      %p65 = por %p63, %p64
      %p66 = scmp.ne.s32.totalorder %s54, %s55
      %p67 = scmp.eq.s32.totalorder %s24, 1
      %p68 = por %p66, %p67
      %p70 = scmp.ne.s32.totalorder %s55, %s69
      %p71 = scmp.eq.s32.totalorder %s24, 0
      %p72 = por %p70, %p71
      %s74 = sadd.s32 %s73, 1
      %p77 = scmp.eq.s32.totalorder %s18, 1
      %p78 = scmp.ne.s32.totalorder %s73, %s75
      %p79 = scmp.eq.s32.totalorder %s18, 0
      %p80 = por %p78, %p79
      %p81 = scmp.ne.s32.totalorder %s73, %s75
      %p82 = scmp.eq.s32.totalorder %s23, 1
      %p83 = por %p81, %p82
      %p84 = scmp.ne.s32.totalorder %s75, %s76
      %p85 = scmp.eq.s32.totalorder %s23, 0
      %p86 = por %p84, %p85
      %p87 = scmp.ne.s32.totalorder %s75, %s76
      %p88 = scmp.eq.s32.totalorder %s24, 1
      %p89 = por %p87, %p88
      %p91 = scmp.ne.s32.totalorder %s76, %s90
      %p92 = scmp.eq.s32.totalorder %s24, 0
      %p93 = por %p91, %p92
      %s95 = sadd.s32 %s94, 1
      %p98 = scmp.eq.s32.totalorder %s18, 1
      %p99 = scmp.ne.s32.totalorder %s94, %s96
      %p100 = scmp.eq.s32.totalorder %s18, 0
      %p101 = por %p99, %p100
      %p102 = scmp.ne.s32.totalorder %s94, %s96
      %p103 = scmp.eq.s32.totalorder %s23, 1
      %p104 = por %p102, %p103
      %p105 = scmp.ne.s32.totalorder %s96, %s97
      %p106 = scmp.eq.s32.totalorder %s23, 0
      %p107 = por %p105, %p106
      %p108 = scmp.ne.s32.totalorder %s96, %s97
      %p109 = scmp.eq.s32.totalorder %s24, 1
      %p110 = por %p108, %p109
      %p112 = scmp.ne.s32.totalorder %s97, %s111
      %p113 = scmp.eq.s32.totalorder %s24, 0
      %p114 = por %p112, %p113
      %s116 = sadd.s32 %s115, 1
      %p119 = scmp.eq.s32.totalorder %s18, 1
      %p120 = scmp.ne.s32.totalorder %s115, %s117
      %p121 = scmp.eq.s32.totalorder %s18, 0
      %p122 = por %p120, %p121
      %p123 = scmp.ne.s32.totalorder %s115, %s117
      %p124 = scmp.eq.s32.totalorder %s23, 1
      %p125 = por %p123, %p124
      %p126 = scmp.ne.s32.totalorder %s117, %s118
      %p127 = scmp.eq.s32.totalorder %s23, 0
      %p128 = por %p126, %p127
      %p129 = scmp.ne.s32.totalorder %s117, %s118
      %p130 = scmp.eq.s32.totalorder %s24, 1
      %p131 = por %p129, %p130
      %p133 = scmp.ne.s32.totalorder %s118, %s132
      %p134 = scmp.eq.s32.totalorder %s24, 0
      %p135 = por %p133, %p134
      %s136 = ssub.s32 %s18, %s25
      %p137 = scmp.eq.s32.totalorder %s136, 0
      %s139 = sadd.s32 %s138, 1
      %s140 = scalar_select %p137, %s138, %s139
      %p143 = pneg %p137
      %p144 = scmp.eq.s32.totalorder %s18, 1
      %p145 = por %p143, %p144
      %p146 = scmp.ne.s32.totalorder %s138, %s141
      %p147 = scmp.eq.s32.totalorder %s18, 0
      %p148 = por %p146, %p147
      %p149 = scmp.ne.s32.totalorder %s138, %s141
      %p150 = scmp.eq.s32.totalorder %s23, 1
      %p151 = por %p149, %p150
      %p152 = scmp.ne.s32.totalorder %s141, %s142
      %p153 = scmp.eq.s32.totalorder %s23, 0
      %p154 = por %p152, %p153
      %p155 = scmp.ne.s32.totalorder %s141, %s142
      %p156 = scmp.eq.s32.totalorder %s24, 1
      %p157 = por %p155, %p156
      %p159 = scmp.ne.s32.totalorder %s142, %s158
      %p160 = scmp.eq.s32.totalorder %s24, 0
      %p161 = por %p159, %p160
      %p162 = scmp.le.s32.totalorder 1, %s18
      %p163 = scmp.lt.s32.totalorder %s18, 3
      %p164 = pnand %p162, %p163
      %p165 = pneg %p164
      // Predicated region
      $region9: #{tpu_custom_call.1} parent=5 // pred_check
        _
      $region10: #{tpu_custom_call.1} parent=5 // pred_check_branch
        %167 = sbr.rel (%p164) target = $region12
      $region11: #{tpu_custom_call.1} parent=5 // pred_region
        %s168 = ssub.s32 %s18, 1
        // Predicated region
        $region13: #{tpu_custom_call.1} parent=11 // pred_check
          %p169 = pneg %p65
        $region14: #{tpu_custom_call.1} parent=11 // pred_check_branch
          %171 = sbr.rel (%p169) target = $region16
        $region15: #{tpu_custom_call.1} parent=11 // pred_region
          %173 = vsyncadd [#allocation7], 0
          %s174 = sshll.u32 %s1, 4
          %s175 = int_to_ptr.hbm [resolvable:$true] %s174
          %s176 = sshll.u32 [#allocation6], 4
          %s177 = int_to_ptr.vmem [resolvable:$true] %s176
          %182 = dma.hbm_to_vmem [thread:$0]  %s175, 256, %s177, [#allocation7], 128, 128, 8
        $region16: #{tpu_custom_call.1} parent=11 // pred_fallthru
          _
        // Predicated region
        $region17: #{tpu_custom_call.1} parent=11 // pred_check
          %p183 = pneg %p86
        $region18: #{tpu_custom_call.1} parent=11 // pred_check_branch
          %185 = sbr.rel (%p183) target = $region20
        $region19: #{tpu_custom_call.1} parent=11 // pred_region
          _
        $region20: #{tpu_custom_call.1} parent=11 // pred_fallthru
          _
        // Predicated region
        $region21: #{tpu_custom_call.1} parent=11 // pred_check
          %p186 = pneg %p107
        $region22: #{tpu_custom_call.1} parent=11 // pred_check_branch
          %188 = sbr.rel (%p186) target = $region24
        $region23: #{tpu_custom_call.1} parent=11 // pred_region
          %190 = vsyncadd [#allocation7], 0
          %s191 = sshll.u32 %s3, 4
          %s192 = int_to_ptr.hbm [resolvable:$true] %s191
          %s193 = sshll.u32 [#allocation8], 4
          %s194 = int_to_ptr.vmem [resolvable:$true] %s193
          %199 = dma.hbm_to_vmem [thread:$0]  %s192, 1024, %s194, [#allocation7], 64, 64, 4
        $region24: #{tpu_custom_call.1} parent=11 // pred_fallthru
          _
        // Predicated region
        $region25: #{tpu_custom_call.1} parent=11 // pred_check
          %p200 = pneg %p128
        $region26: #{tpu_custom_call.1} parent=11 // pred_check_branch
          %202 = sbr.rel (%p200) target = $region28
        $region27: #{tpu_custom_call.1} parent=11 // pred_region
          _
        $region28: #{tpu_custom_call.1} parent=11 // pred_fallthru
          _
      $region12: #{tpu_custom_call.1} parent=5 // pred_fallthru
        _
      %p203 = scmp.lt.s32.totalorder %s18, 2
      // Predicated region
      $region29: #{tpu_custom_call.1} parent=5 // pred_check
        %p204 = pneg %p203
      $region30: #{tpu_custom_call.1} parent=5 // pred_check_branch
        %206 = sbr.rel (%p204) target = $region32
      $region31: #{tpu_custom_call.1} parent=5 // pred_region
        // Predicated region
        $region33: #{tpu_custom_call.1} parent=31 // pred_check
          %p207 = pneg %p38
        $region34: #{tpu_custom_call.1} parent=31 // pred_check_branch
          %209 = sbr.rel (%p207) target = $region36
        $region35: #{tpu_custom_call.1} parent=31 // pred_region
          %s210 = sand.u32 %s28, 1
          %s211 = scalar_lea.sflag [#allocation4], %s210
          %s212 = sand.u32 %s28, 1
          %s213 = smul.addr %s212, 256
          %s214 = scalar_lea.vmem [#allocation3], %s213
          %216 = vsyncadd %s211, 0
          %s217 = smul.addr %s18, 32
          %s218 = smul.addr %s217, 8
          %s219 = scalar_lea.hbm %s0, %s218
          %s220 = sshll.u32 %s219, 4
          %s221 = int_to_ptr.hbm [resolvable:$true] %s220
          %s222 = sshll.u32 %s214, 4
          %s223 = int_to_ptr.vmem [resolvable:$true] %s222
          %228 = dma.hbm_to_vmem [thread:$0]  %s221, 4096, %s223, %s211, 128, 128, 8
        $region36: #{tpu_custom_call.1} parent=31 // pred_fallthru
          _
      $region32: #{tpu_custom_call.1} parent=5 // pred_fallthru
        _
      %p229 = scmp.le.s32.totalorder 1, %s18
      %p230 = scmp.lt.s32.totalorder %s18, 3
      %p231 = pnand %p229, %p230
      %p232 = pneg %p231
      // Predicated region
      $region37: #{tpu_custom_call.1} parent=5 // pred_check
        _
      $region38: #{tpu_custom_call.1} parent=5 // pred_check_branch
        %234 = sbr.rel (%p231) target = $region40
      $region39: #{tpu_custom_call.1} parent=5 // pred_region
        %s235 = ssub.s32 %s18, 1
        %s236 = sand.u32 %s31, 1
        %s237 = scalar_lea.sflag [#allocation4], %s236
        %s238 = sand.u32 %s31, 1
        %s239 = smul.addr %s238, 256
        %s240 = scalar_lea.vmem [#allocation3], %s239
        // Predicated region
        $region41: #{tpu_custom_call.1} parent=39 // pred_check
          %p241 = pneg %p44
        $region42: #{tpu_custom_call.1} parent=39 // pred_check_branch
          %243 = sbr.rel (%p241) target = $region44
        $region43: #{tpu_custom_call.1} parent=39 // pred_region
          %245 = dma.done %s237, 4096
        $region44: #{tpu_custom_call.1} parent=39 // pred_fallthru
          _
        // Predicated region
        $region45: #{tpu_custom_call.1} parent=39 // pred_check
          %p246 = pneg %p65
        $region46: #{tpu_custom_call.1} parent=39 // pred_check_branch
          %248 = sbr.rel (%p246) target = $region48
        $region47: #{tpu_custom_call.1} parent=39 // pred_region
          %250 = dma.done [#allocation7], 256
        $region48: #{tpu_custom_call.1} parent=39 // pred_fallthru
          _
        // Predicated region
        $region49: #{tpu_custom_call.1} parent=39 // pred_check
          %p251 = pneg %p107
        $region50: #{tpu_custom_call.1} parent=39 // pred_check_branch
          %253 = sbr.rel (%p251) target = $region52
        $region51: #{tpu_custom_call.1} parent=39 // pred_region
          %255 = dma.done [#allocation7], 1024
        $region52: #{tpu_custom_call.1} parent=39 // pred_fallthru
          _
        %s256 = sand.u32 %s31, 1
        %s257 = scalar_lea.sflag [#allocation4], %s256
        %s258 = sand.u32 %s31, 1
        %s259 = smul.addr %s258, 256
        %s260 = scalar_lea.vmem [#allocation3], %s259
        %p261 = pneg %p44
        %p262 = pneg %p41
        %p263 = pneg %p65
        %p264 = pneg %p62
        %p265 = pneg %p86
        %p266 = pneg %p83
        %p267 = pneg %p107
        %p268 = pneg %p104
        %p269 = pneg %p128
        %p270 = pneg %p125
        %p271 = pneg %p154
        %p272 = pneg %p151
        %s273 = sand.u32 %s141, 1
        %s274 = scalar_lea.sflag [#allocation5], %s273
        %s275 = sand.u32 %s141, 1
        %s276 = smul.addr %s275, 256
        %s277 = scalar_lea.vmem [#allocation9], %s276
        %278 = vst [vmem:[#allocation2] sm:$0xff] 0.0
        %279 = vst [vmem:[#allocation2 + $0x8] sm:$0xff] 0.0
        %280 = vst [vmem:[#allocation2 + $0x10] sm:$0x3] 0.0
        %281 = vst [vmem:[#allocation2 + $0x18] sm:$0xff] 0.0
        %282 = vst [vmem:[#allocation2 + $0x20] sm:$0xff] 0.0
        %283 = vst [vmem:[#allocation2 + $0x28] sm:$0x3] 0.0
        %284 = vst [vmem:[#allocation2 + $0x30] sm:$0xff] 0.0
        %285 = vst [vmem:[#allocation2 + $0x38] sm:$0xff] 0.0
        %286 = vst [vmem:[#allocation2 + $0x40] sm:$0x3] 0.0
        %287 = vst [vmem:[#allocation2 + $0x48] sm:$0xff] 0.0
        %288 = vst [vmem:[#allocation2 + $0x50] sm:$0xff] 0.0
        %289 = vst [vmem:[#allocation2 + $0x58] sm:$0x3] 0.0
        %290 = vst [vmem:[#allocation2 + $0x60] sm:$0xff] 0.0
        %291 = vst [vmem:[#allocation2 + $0x68] sm:$0xff] 0.0
        %292 = vst [vmem:[#allocation2 + $0x70] sm:$0x3] 0.0
        %293 = vst [vmem:[#allocation2 + $0x78] sm:$0xff] 0.0
        %294 = vst [vmem:[#allocation2 + $0x80] sm:$0xff] 0.0
        %295 = vst [vmem:[#allocation2 + $0x88] sm:$0x3] 0.0
        %296 = vst [vmem:[#allocation2 + $0x90] sm:$0xff] 0.0
        %297 = vst [vmem:[#allocation2 + $0x98] sm:$0xff] 0.0
        %298 = vst [vmem:[#allocation2 + $0xa0] sm:$0x3] 0.0
        %299 = vst [vmem:[#allocation2 + $0xa8] sm:$0xff] 0.0
        %300 = vst [vmem:[#allocation2 + $0xb0] sm:$0xff] 0.0
        %301 = vst [vmem:[#allocation2 + $0xb8] sm:$0x3] 0.0
        %302 = vst [vmem:[#allocation2 + $0xc0] sm:$0xff] 0.0
        %303 = vst [vmem:[#allocation2 + $0xc8] sm:$0xff] 0.0
        %304 = vst [vmem:[#allocation2 + $0xd0] sm:$0x3] 0.0
        %305 = vst [vmem:[#allocation2 + $0xd8] sm:$0xff] 0.0
        %306 = vst [vmem:[#allocation2 + $0xe0] sm:$0xff] 0.0
        %307 = vst [vmem:[#allocation2 + $0xe8] sm:$0x3] 0.0
        %308 = vst [vmem:[#allocation2 + $0xf0] sm:$0xff] 0.0
        %309 = vst [vmem:[#allocation2 + $0xf8] sm:$0xff] 0.0
        %310 = vst [vmem:[#allocation2 + $0x100] sm:$0x3] 0.0
        %311 = vst [vmem:[#allocation2 + $0x108] sm:$0xff] 0.0
        %312 = vst [vmem:[#allocation2 + $0x110] sm:$0xff] 0.0
        %313 = vst [vmem:[#allocation2 + $0x118] sm:$0x3] 0.0
        %314 = vst [vmem:[#allocation2 + $0x120] sm:$0xff] 0.0
        %315 = vst [vmem:[#allocation2 + $0x128] sm:$0xff] 0.0
        %316 = vst [vmem:[#allocation2 + $0x130] sm:$0x3] 0.0
        %317 = vst [vmem:[#allocation2 + $0x138] sm:$0xff] 0.0
        %318 = vst [vmem:[#allocation2 + $0x140] sm:$0xff] 0.0
        %319 = vst [vmem:[#allocation2 + $0x148] sm:$0x3] 0.0
        %320 = vst [vmem:[#allocation2 + $0x150] sm:$0xff] 0.0
        %321 = vst [vmem:[#allocation2 + $0x158] sm:$0xff] 0.0
        %322 = vst [vmem:[#allocation2 + $0x160] sm:$0x3] 0.0
        %323 = vst [vmem:[#allocation2 + $0x168] sm:$0xff] 0.0
        %324 = vst [vmem:[#allocation2 + $0x170] sm:$0xff] 0.0
        %325 = vst [vmem:[#allocation2 + $0x178] sm:$0x3] 0.0
        %326 = vst [vmem:[#allocation2 + $0x180] sm:$0xff] 0.0
        %327 = vst [vmem:[#allocation2 + $0x188] sm:$0xff] 0.0
        %328 = vst [vmem:[#allocation2 + $0x190] sm:$0x3] 0.0
        %329 = vst [vmem:[#allocation2 + $0x198] sm:$0xff] 0.0
        %330 = vst [vmem:[#allocation2 + $0x1a0] sm:$0xff] 0.0
        %331 = vst [vmem:[#allocation2 + $0x1a8] sm:$0x3] 0.0
        %v332 = vld [vmem:[%s240] sm:$0xff]
        %v333 = vld [vmem:[%s240 + $0x8] sm:$0xff]
        %v334 = vld [vmem:[%s240 + $0x10] sm:$0xff]
        %v335 = vld [vmem:[%s240 + $0x18] sm:$0xff]
        %v336 = vld [vmem:[%s240 + $0x20] sm:$0xff]
        %v337 = vld [vmem:[%s240 + $0x28] sm:$0xff]
        %v338 = vld [vmem:[%s240 + $0x30] sm:$0xff]
        %v339 = vld [vmem:[%s240 + $0x38] sm:$0xff]
        %v340 = vld [vmem:[%s240 + $0x40] sm:$0xff]
        %v341 = vld [vmem:[%s240 + $0x48] sm:$0xff]
        %v342 = vld [vmem:[%s240 + $0x50] sm:$0xff]
        %v343 = vld [vmem:[%s240 + $0x58] sm:$0xff]
        %v344 = vld [vmem:[%s240 + $0x60] sm:$0xff]
        %v345 = vld [vmem:[%s240 + $0x68] sm:$0xff]
        %v346 = vld [vmem:[%s240 + $0x70] sm:$0xff]
        %v347 = vld [vmem:[%s240 + $0x78] sm:$0xff]
        %v348 = vld [vmem:[%s240 + $0x80] sm:$0xff]
        %v349 = vld [vmem:[%s240 + $0x88] sm:$0xff]
        %v350 = vld [vmem:[%s240 + $0x90] sm:$0xff]
        %v351 = vld [vmem:[%s240 + $0x98] sm:$0xff]
        %v352 = vld [vmem:[%s240 + $0xa0] sm:$0xff]
        %v353 = vld [vmem:[%s240 + $0xa8] sm:$0xff]
        %v354 = vld [vmem:[%s240 + $0xb0] sm:$0xff]
        %v355 = vld [vmem:[%s240 + $0xb8] sm:$0xff]
        %v356 = vld [vmem:[%s240 + $0xc0] sm:$0xff]
        %v357 = vld [vmem:[%s240 + $0xc8] sm:$0xff]
        %v358 = vld [vmem:[%s240 + $0xd0] sm:$0xff]
        %v359 = vld [vmem:[%s240 + $0xd8] sm:$0xff]
        %v360 = vld [vmem:[%s240 + $0xe0] sm:$0xff]
        %v361 = vld [vmem:[%s240 + $0xe8] sm:$0xff]
        %v362 = vld [vmem:[%s240 + $0xf0] sm:$0xff]
        %v363 = vld [vmem:[%s240 + $0xf8] sm:$0xff]
        %s364 = scalar_lea.vmem [#allocation2], 24
        %365 = vst [vmem:[%s364 + $0x1] sm:$0xff] %v332
        %366 = vst [vmem:[%s364 + $0x9] sm:$0xff] %v333
        %367 = vst [vmem:[%s364 + $0x19] sm:$0xff] %v334
        %368 = vst [vmem:[%s364 + $0x21] sm:$0xff] %v335
        %369 = vst [vmem:[%s364 + $0x31] sm:$0xff] %v336
        %370 = vst [vmem:[%s364 + $0x39] sm:$0xff] %v337
        %371 = vst [vmem:[%s364 + $0x49] sm:$0xff] %v338
        %372 = vst [vmem:[%s364 + $0x51] sm:$0xff] %v339
        %373 = vst [vmem:[%s364 + $0x61] sm:$0xff] %v340
        %374 = vst [vmem:[%s364 + $0x69] sm:$0xff] %v341
        %375 = vst [vmem:[%s364 + $0x79] sm:$0xff] %v342
        %376 = vst [vmem:[%s364 + $0x81] sm:$0xff] %v343
        %377 = vst [vmem:[%s364 + $0x91] sm:$0xff] %v344
        %378 = vst [vmem:[%s364 + $0x99] sm:$0xff] %v345
        %379 = vst [vmem:[%s364 + $0xa9] sm:$0xff] %v346
        %380 = vst [vmem:[%s364 + $0xb1] sm:$0xff] %v347
        %381 = vst [vmem:[%s364 + $0xc1] sm:$0xff] %v348
        %382 = vst [vmem:[%s364 + $0xc9] sm:$0xff] %v349
        %383 = vst [vmem:[%s364 + $0xd9] sm:$0xff] %v350
        %384 = vst [vmem:[%s364 + $0xe1] sm:$0xff] %v351
        %385 = vst [vmem:[%s364 + $0xf1] sm:$0xff] %v352
        %386 = vst [vmem:[%s364 + $0xf9] sm:$0xff] %v353
        %387 = vst [vmem:[%s364 + $0x109] sm:$0xff] %v354
        %388 = vst [vmem:[%s364 + $0x111] sm:$0xff] %v355
        %389 = vst [vmem:[%s364 + $0x121] sm:$0xff] %v356
        %390 = vst [vmem:[%s364 + $0x129] sm:$0xff] %v357
        %391 = vst [vmem:[%s364 + $0x139] sm:$0xff] %v358
        %392 = vst [vmem:[%s364 + $0x141] sm:$0xff] %v359
        %393 = vst [vmem:[%s364 + $0x151] sm:$0xff] %v360
        %394 = vst [vmem:[%s364 + $0x159] sm:$0xff] %v361
        %395 = vst [vmem:[%s364 + $0x169] sm:$0xff] %v362
        %396 = vst [vmem:[%s364 + $0x171] sm:$0xff] %v363
        %v397 = vld [vmem:[%s2] sm:$0x1]
        %v398 = vld [vmem:[%s4] sm:$0x1]
        %v399 = vld [vmem:[#allocation8] sm:$0xf]
        %v400 = vld [vmem:[#allocation8 + $0x4] sm:$0xf]
        %v401 = vld [vmem:[#allocation8 + $0x8] sm:$0xf]
        %v402 = vld [vmem:[#allocation8 + $0xc] sm:$0xf]
        %v403 = vld [vmem:[#allocation8 + $0x10] sm:$0xf]
        %v404 = vld [vmem:[#allocation8 + $0x14] sm:$0xf]
        %v405 = vld [vmem:[#allocation8 + $0x18] sm:$0xf]
        %v406 = vld [vmem:[#allocation8 + $0x1c] sm:$0xf]
        %v407 = vld [vmem:[#allocation8 + $0x20] sm:$0xf]
        %v408 = vld [vmem:[#allocation8 + $0x24] sm:$0xf]
        %v409 = vld [vmem:[#allocation8 + $0x28] sm:$0xf]
        %v410 = vld [vmem:[#allocation8 + $0x2c] sm:$0xf]
        %v411 = vld [vmem:[#allocation8 + $0x30] sm:$0xf]
        %v412 = vld [vmem:[#allocation8 + $0x34] sm:$0xf]
        %v413 = vld [vmem:[#allocation8 + $0x38] sm:$0xf]
        %v414 = vld [vmem:[#allocation8 + $0x3c] sm:$0xf]
        %v415 = vld [vmem:[#allocation2] sm:$0xff]
        %v416 = vld [vmem:[#allocation2 + $0x8] sm:$0xff]
        %v417 = vld [vmem:[#allocation2 + $0x18] sm:$0xff]
        %v418 = vld [vmem:[#allocation2 + $0x20] sm:$0xff]
        %v419 = vld [vmem:[#allocation2 + $0x30] sm:$0xff]
        %v420 = vld [vmem:[#allocation2 + $0x38] sm:$0xff]
        %v421 = vld [vmem:[#allocation2 + $0x48] sm:$0xff]
        %v422 = vld [vmem:[#allocation2 + $0x50] sm:$0xff]
        %v423 = vld [vmem:[#allocation2 + $0x60] sm:$0xff]
        %v424 = vld [vmem:[#allocation2 + $0x68] sm:$0xff]
        %v425 = vld [vmem:[#allocation2 + $0x78] sm:$0xff]
        %v426 = vld [vmem:[#allocation2 + $0x80] sm:$0xff]
        %v427 = vld [vmem:[#allocation2 + $0x1] sm:$0xff]
        %v428 = vld [vmem:[#allocation2 + $0x9] sm:$0xff]
        %v429 = vld [vmem:[#allocation2 + $0x19] sm:$0xff]
        %v430 = vld [vmem:[#allocation2 + $0x21] sm:$0xff]
        %v431 = vld [vmem:[#allocation2 + $0x31] sm:$0xff]
        %v432 = vld [vmem:[#allocation2 + $0x39] sm:$0xff]
        %v433 = vld [vmem:[#allocation2 + $0x49] sm:$0xff]
        %v434 = vld [vmem:[#allocation2 + $0x51] sm:$0xff]
        %v435 = vld [vmem:[#allocation2 + $0x61] sm:$0xff]
        %v436 = vld [vmem:[#allocation2 + $0x69] sm:$0xff]
        %v437 = vld [vmem:[#allocation2 + $0x79] sm:$0xff]
        %v438 = vld [vmem:[#allocation2 + $0x81] sm:$0xff]
        %v439 = vld [vmem:[#allocation2 + $0x2] sm:$0xff]
        %v440 = vld [vmem:[#allocation2 + $0xa] sm:$0xff]
        %v441 = vld [vmem:[#allocation2 + $0x1a] sm:$0xff]
        %v442 = vld [vmem:[#allocation2 + $0x22] sm:$0xff]
        %v443 = vld [vmem:[#allocation2 + $0x32] sm:$0xff]
        %v444 = vld [vmem:[#allocation2 + $0x3a] sm:$0xff]
        %v445 = vld [vmem:[#allocation2 + $0x4a] sm:$0xff]
        %v446 = vld [vmem:[#allocation2 + $0x52] sm:$0xff]
        %v447 = vld [vmem:[#allocation2 + $0x62] sm:$0xff]
        %v448 = vld [vmem:[#allocation2 + $0x6a] sm:$0xff]
        %v449 = vld [vmem:[#allocation2 + $0x7a] sm:$0xff]
        %v450 = vld [vmem:[#allocation2 + $0x82] sm:$0xff]
        %v451 = vld [vmem:[#allocation6] sm:$0x1]
        %v452 = vperm.slane %v451, 0
        %v453 = vmul.f32 %v415, %v452
        %v454 = vmul.f32 %v416, %v452
        %v455 = vmul.f32 %v417, %v452
        %v456 = vmul.f32 %v418, %v452
        %v457 = vmul.f32 %v419, %v452
        %v458 = vmul.f32 %v420, %v452
        %v459 = vmul.f32 %v421, %v452
        %v460 = vmul.f32 %v422, %v452
        %v461 = vadd.f32 %v453, 0.0
        %v462 = vadd.f32 %v454, 0.0
        %v463 = vadd.f32 %v455, 0.0
        %v464 = vadd.f32 %v456, 0.0
        %v465 = vadd.f32 %v457, 0.0
        %v466 = vadd.f32 %v458, 0.0
        %v467 = vadd.f32 %v459, 0.0
        %v468 = vadd.f32 %v460, 0.0
        %v469 = vld [vmem:[#allocation6 + $0x1] sm:$0x1]
        %v470 = vperm.slane %v469, 0
        %v471 = vmul.f32 %v427, %v470
        %v472 = vmul.f32 %v428, %v470
        %v473 = vmul.f32 %v429, %v470
        %v474 = vmul.f32 %v430, %v470
        %v475 = vmul.f32 %v431, %v470
        %v476 = vmul.f32 %v432, %v470
        %v477 = vmul.f32 %v433, %v470
        %v478 = vmul.f32 %v434, %v470
        %v479 = vadd.f32 %v461, %v471
        %v480 = vadd.f32 %v462, %v472
        %v481 = vadd.f32 %v463, %v473
        %v482 = vadd.f32 %v464, %v474
        %v483 = vadd.f32 %v465, %v475
        %v484 = vadd.f32 %v466, %v476
        %v485 = vadd.f32 %v467, %v477
        %v486 = vadd.f32 %v468, %v478
        %v487 = vld [vmem:[#allocation6 + $0x2] sm:$0x1]
        %v488 = vperm.slane %v487, 0
        %v489 = vmul.f32 %v439, %v488
        %v490 = vmul.f32 %v440, %v488
        %v491 = vmul.f32 %v441, %v488
        %v492 = vmul.f32 %v442, %v488
        %v493 = vmul.f32 %v443, %v488
        %v494 = vmul.f32 %v444, %v488
        %v495 = vmul.f32 %v445, %v488
        %v496 = vmul.f32 %v446, %v488
        %v497 = vadd.f32 %v479, %v489
        %v498 = vadd.f32 %v480, %v490
        %v499 = vadd.f32 %v481, %v491
        %v500 = vadd.f32 %v482, %v492
        %v501 = vadd.f32 %v483, %v493
        %v502 = vadd.f32 %v484, %v494
        %v503 = vadd.f32 %v485, %v495
        %v504 = vadd.f32 %v486, %v496
        %v505 = vld [vmem:[#allocation6 + $0x3] sm:$0x1]
        %v506 = vperm.slane %v505, 0
        %v507 = vmul.f32 %v417, %v506
        %v508 = vmul.f32 %v418, %v506
        %v509 = vmul.f32 %v419, %v506
        %v510 = vmul.f32 %v420, %v506
        %v511 = vmul.f32 %v421, %v506
        %v512 = vmul.f32 %v422, %v506
        %v513 = vmul.f32 %v423, %v506
        %v514 = vmul.f32 %v424, %v506
        %v515 = vadd.f32 %v497, %v507
        %v516 = vadd.f32 %v498, %v508
        %v517 = vadd.f32 %v499, %v509
        %v518 = vadd.f32 %v500, %v510
        %v519 = vadd.f32 %v501, %v511
        %v520 = vadd.f32 %v502, %v512
        %v521 = vadd.f32 %v503, %v513
        %v522 = vadd.f32 %v504, %v514
        %v523 = vld [vmem:[#allocation6 + $0x4] sm:$0x1]
        %v524 = vperm.slane %v523, 0
        %v525 = vmul.f32 %v429, %v524
        %v526 = vmul.f32 %v430, %v524
        %v527 = vmul.f32 %v431, %v524
        %v528 = vmul.f32 %v432, %v524
        %v529 = vmul.f32 %v433, %v524
        %v530 = vmul.f32 %v434, %v524
        %v531 = vmul.f32 %v435, %v524
        %v532 = vmul.f32 %v436, %v524
        %v533 = vadd.f32 %v515, %v525
        %v534 = vadd.f32 %v516, %v526
        %v535 = vadd.f32 %v517, %v527
        %v536 = vadd.f32 %v518, %v528
        %v537 = vadd.f32 %v519, %v529
        %v538 = vadd.f32 %v520, %v530
        %v539 = vadd.f32 %v521, %v531
        %v540 = vadd.f32 %v522, %v532
        %v541 = vld [vmem:[#allocation6 + $0x5] sm:$0x1]
        %v542 = vperm.slane %v541, 0
        %v543 = vmul.f32 %v441, %v542
        %v544 = vmul.f32 %v442, %v542
        %v545 = vmul.f32 %v443, %v542
        %v546 = vmul.f32 %v444, %v542
        %v547 = vmul.f32 %v445, %v542
        %v548 = vmul.f32 %v446, %v542
        %v549 = vmul.f32 %v447, %v542
        %v550 = vmul.f32 %v448, %v542
        %v551 = vadd.f32 %v533, %v543
        %v552 = vadd.f32 %v534, %v544
        %v553 = vadd.f32 %v535, %v545
        %v554 = vadd.f32 %v536, %v546
        %v555 = vadd.f32 %v537, %v547
        %v556 = vadd.f32 %v538, %v548
        %v557 = vadd.f32 %v539, %v549
        %v558 = vadd.f32 %v540, %v550
        %v559 = vld [vmem:[#allocation6 + $0x6] sm:$0x1]
        %v560 = vperm.slane %v559, 0
        %v561 = vmul.f32 %v419, %v560
        %v562 = vmul.f32 %v420, %v560
        %v563 = vmul.f32 %v421, %v560
        %v564 = vmul.f32 %v422, %v560
        %v565 = vmul.f32 %v423, %v560
        %v566 = vmul.f32 %v424, %v560
        %v567 = vmul.f32 %v425, %v560
        %v568 = vmul.f32 %v426, %v560
        %v569 = vadd.f32 %v551, %v561
        %v570 = vadd.f32 %v552, %v562
        %v571 = vadd.f32 %v553, %v563
        %v572 = vadd.f32 %v554, %v564
        %v573 = vadd.f32 %v555, %v565
        %v574 = vadd.f32 %v556, %v566
        %v575 = vadd.f32 %v557, %v567
        %v576 = vadd.f32 %v558, %v568
        %v577 = vld [vmem:[#allocation6 + $0x7] sm:$0x1]
        %v578 = vperm.slane %v577, 0
        %v579 = vmul.f32 %v431, %v578
        %v580 = vmul.f32 %v432, %v578
        %v581 = vmul.f32 %v433, %v578
        %v582 = vmul.f32 %v434, %v578
        %v583 = vmul.f32 %v435, %v578
        %v584 = vmul.f32 %v436, %v578
        %v585 = vmul.f32 %v437, %v578
        %v586 = vmul.f32 %v438, %v578
        %v587 = vadd.f32 %v569, %v579
        %v588 = vadd.f32 %v570, %v580
        %v589 = vadd.f32 %v571, %v581
        %v590 = vadd.f32 %v572, %v582
        %v591 = vadd.f32 %v573, %v583
        %v592 = vadd.f32 %v574, %v584
        %v593 = vadd.f32 %v575, %v585
        %v594 = vadd.f32 %v576, %v586
        %v595 = vld [vmem:[#allocation6 + $0x8] sm:$0x1]
        %v596 = vperm.slane %v595, 0
        %v597 = vmul.f32 %v443, %v596
        %v598 = vmul.f32 %v444, %v596
        %v599 = vmul.f32 %v445, %v596
        %v600 = vmul.f32 %v446, %v596
        %v601 = vmul.f32 %v447, %v596
        %v602 = vmul.f32 %v448, %v596
        %v603 = vmul.f32 %v449, %v596
        %v604 = vmul.f32 %v450, %v596
        %v605 = vadd.f32 %v587, %v597
        %v606 = vadd.f32 %v588, %v598
        %v607 = vadd.f32 %v589, %v599
        %v608 = vadd.f32 %v590, %v600
        %v609 = vadd.f32 %v591, %v601
        %v610 = vadd.f32 %v592, %v602
        %v611 = vadd.f32 %v593, %v603
        %v612 = vadd.f32 %v594, %v604
        %v614 = vperm.slane %v397, 0
        %v616 = vadd.f32 %v605, %v614
        %v617 = vadd.f32 %v606, %v614
        %v618 = vadd.f32 %v607, %v614
        %v619 = vadd.f32 %v608, %v614
        %v620 = vadd.f32 %v609, %v614
        %v621 = vadd.f32 %v610, %v614
        %v622 = vadd.f32 %v611, %v614
        %v623 = vadd.f32 %v612, %v614
        %v624 = vmax.f32 %v616, 0.0
        %v625 = vmax.f32 %v617, 0.0
        %v626 = vmax.f32 %v618, 0.0
        %v627 = vmax.f32 %v619, 0.0
        %v628 = vmax.f32 %v620, 0.0
        %v629 = vmax.f32 %v621, 0.0
        %v630 = vmax.f32 %v622, 0.0
        %v631 = vmax.f32 %v623, 0.0
        %v632 = vmin.f32 %v624, 6.0
        %v633 = vmin.f32 %v625, 6.0
        %v634 = vmin.f32 %v626, 6.0
        %v635 = vmin.f32 %v627, 6.0
        %v636 = vmin.f32 %v628, 6.0
        %v637 = vmin.f32 %v629, 6.0
        %v638 = vmin.f32 %v630, 6.0
        %v639 = vmin.f32 %v631, 6.0
        %v640 = vpack.c.bf16 %v633, %v632
        %v641 = vpack.c.bf16 %v635, %v634
        %v642 = vpack.c.bf16 %v637, %v636
        %v643 = vpack.c.bf16 %v639, %v638
        %v645 = vperm.slane %v398, 0
        %v663 = vunpack.c.l.b16 %v399
        %v664 = vunpack.c.l.b16 %v400
        %v665 = vunpack.c.l.b16 %v401
        %v666 = vunpack.c.l.b16 %v402
        %v667 = vunpack.c.l.b16 %v403
        %v668 = vunpack.c.l.b16 %v404
        %v669 = vunpack.c.l.b16 %v405
        %v670 = vunpack.c.l.b16 %v406
        %v671 = vunpack.c.l.b16 %v407
        %v672 = vunpack.c.l.b16 %v408
        %v673 = vunpack.c.l.b16 %v409
        %v674 = vunpack.c.l.b16 %v410
        %v675 = vunpack.c.l.b16 %v411
        %v676 = vunpack.c.l.b16 %v412
        %v677 = vunpack.c.l.b16 %v413
        %v678 = vunpack.c.l.b16 %v414
        %v679 = vpack.c.b16 %v664, %v663
        %v680 = vpack.c.b16 %v666, %v665
        %v681 = vpack.c.b16 %v668, %v667
        %v682 = vpack.c.b16 %v670, %v669
        %v683 = vpack.c.b16 %v672, %v671
        %v684 = vpack.c.b16 %v674, %v673
        %v685 = vpack.c.b16 %v676, %v675
        %v686 = vpack.c.b16 %v678, %v677
        %695 = vmatpush.bf16.msra.mxu0 %v686
        %696 = vmatpush.bf16.msra.mxu0 %v685
        %697 = vmatpush.bf16.msra.mxu0 %v684
        %698 = vmatpush.bf16.msra.mxu0 %v683
        %699 = vmatpush.bf16.msra.mxu0 %v682
        %700 = vmatpush.bf16.msra.mxu0 %v681
        %701 = vmatpush.bf16.msra.mxu0 %v680
        %702 = vmatpush.bf16.msra.mxu0 %v679
        %703 = vmatmul.bf16.gmra.mxu0 %v640
        %v704 = vpop.f32.mrf.mxu0
        %v705 = vadd.f32 %v645, %v704
        %v706 = vpop.f32.mrf.mxu0
        %v707 = vadd.f32 %v645, %v706
        %708 = vmatmul.bf16.gmra.mxu0 %v641
        %v709 = vpop.f32.mrf.mxu0
        %v710 = vadd.f32 %v645, %v709
        %v711 = vpop.f32.mrf.mxu0
        %v712 = vadd.f32 %v645, %v711
        %713 = vmatmul.bf16.gmra.mxu0 %v642
        %v714 = vpop.f32.mrf.mxu0
        %v715 = vadd.f32 %v645, %v714
        %v716 = vpop.f32.mrf.mxu0
        %v717 = vadd.f32 %v645, %v716
        %718 = vmatmul.bf16.gmra.mxu0 %v643
        %v719 = vpop.f32.mrf.mxu0
        %v720 = vadd.f32 %v645, %v719
        %v721 = vpop.f32.mrf.mxu0
        %v722 = vadd.f32 %v645, %v721
        %723 = vdwg.mxu0
        %724 = vst [vmem:[%s277] sm:$0xff] %v705
        %725 = vst [vmem:[%s277 + $0x8] sm:$0xff] %v707
        %726 = vst [vmem:[%s277 + $0x10] sm:$0xff] %v710
        %727 = vst [vmem:[%s277 + $0x18] sm:$0xff] %v712
        %728 = vst [vmem:[%s277 + $0x20] sm:$0xff] %v715
        %729 = vst [vmem:[%s277 + $0x28] sm:$0xff] %v717
        %730 = vst [vmem:[%s277 + $0x30] sm:$0xff] %v720
        %731 = vst [vmem:[%s277 + $0x38] sm:$0xff] %v722
        %s732 = scalar_lea.vmem [#allocation2], 96
        %v733 = vld [vmem:[%s732] sm:$0xff]
        %v734 = vld [vmem:[%s732 + $0x8] sm:$0xff]
        %v735 = vld [vmem:[%s732 + $0x18] sm:$0xff]
        %v736 = vld [vmem:[%s732 + $0x20] sm:$0xff]
        %v737 = vld [vmem:[%s732 + $0x30] sm:$0xff]
        %v738 = vld [vmem:[%s732 + $0x38] sm:$0xff]
        %v739 = vld [vmem:[%s732 + $0x48] sm:$0xff]
        %v740 = vld [vmem:[%s732 + $0x50] sm:$0xff]
        %v741 = vld [vmem:[%s732 + $0x60] sm:$0xff]
        %v742 = vld [vmem:[%s732 + $0x68] sm:$0xff]
        %v743 = vld [vmem:[%s732 + $0x78] sm:$0xff]
        %v744 = vld [vmem:[%s732 + $0x80] sm:$0xff]
        %v745 = vld [vmem:[%s732 + $0x1] sm:$0xff]
        %v746 = vld [vmem:[%s732 + $0x9] sm:$0xff]
        %v747 = vld [vmem:[%s732 + $0x19] sm:$0xff]
        %v748 = vld [vmem:[%s732 + $0x21] sm:$0xff]
        %v749 = vld [vmem:[%s732 + $0x31] sm:$0xff]
        %v750 = vld [vmem:[%s732 + $0x39] sm:$0xff]
        %v751 = vld [vmem:[%s732 + $0x49] sm:$0xff]
        %v752 = vld [vmem:[%s732 + $0x51] sm:$0xff]
        %v753 = vld [vmem:[%s732 + $0x61] sm:$0xff]
        %v754 = vld [vmem:[%s732 + $0x69] sm:$0xff]
        %v755 = vld [vmem:[%s732 + $0x79] sm:$0xff]
        %v756 = vld [vmem:[%s732 + $0x81] sm:$0xff]
        %v757 = vld [vmem:[%s732 + $0x2] sm:$0xff]
        %v758 = vld [vmem:[%s732 + $0xa] sm:$0xff]
        %v759 = vld [vmem:[%s732 + $0x1a] sm:$0xff]
        %v760 = vld [vmem:[%s732 + $0x22] sm:$0xff]
        %v761 = vld [vmem:[%s732 + $0x32] sm:$0xff]
        %v762 = vld [vmem:[%s732 + $0x3a] sm:$0xff]
        %v763 = vld [vmem:[%s732 + $0x4a] sm:$0xff]
        %v764 = vld [vmem:[%s732 + $0x52] sm:$0xff]
        %v765 = vld [vmem:[%s732 + $0x62] sm:$0xff]
        %v766 = vld [vmem:[%s732 + $0x6a] sm:$0xff]
        %v767 = vld [vmem:[%s732 + $0x7a] sm:$0xff]
        %v768 = vld [vmem:[%s732 + $0x82] sm:$0xff]
        %v769 = vld [vmem:[#allocation6] sm:$0x1]
        %v770 = vperm.slane %v769, 0
        %v771 = vmul.f32 %v733, %v770
        %v772 = vmul.f32 %v734, %v770
        %v773 = vmul.f32 %v735, %v770
        %v774 = vmul.f32 %v736, %v770
        %v775 = vmul.f32 %v737, %v770
        %v776 = vmul.f32 %v738, %v770
        %v777 = vmul.f32 %v739, %v770
        %v778 = vmul.f32 %v740, %v770
        %v779 = vadd.f32 %v771, 0.0
        %v780 = vadd.f32 %v772, 0.0
        %v781 = vadd.f32 %v773, 0.0
        %v782 = vadd.f32 %v774, 0.0
        %v783 = vadd.f32 %v775, 0.0
        %v784 = vadd.f32 %v776, 0.0
        %v785 = vadd.f32 %v777, 0.0
        %v786 = vadd.f32 %v778, 0.0
        %v787 = vld [vmem:[#allocation6 + $0x1] sm:$0x1]
        %v788 = vperm.slane %v787, 0
        %v789 = vmul.f32 %v745, %v788
        %v790 = vmul.f32 %v746, %v788
        %v791 = vmul.f32 %v747, %v788
        %v792 = vmul.f32 %v748, %v788
        %v793 = vmul.f32 %v749, %v788
        %v794 = vmul.f32 %v750, %v788
        %v795 = vmul.f32 %v751, %v788
        %v796 = vmul.f32 %v752, %v788
        %v797 = vadd.f32 %v779, %v789
        %v798 = vadd.f32 %v780, %v790
        %v799 = vadd.f32 %v781, %v791
        %v800 = vadd.f32 %v782, %v792
        %v801 = vadd.f32 %v783, %v793
        %v802 = vadd.f32 %v784, %v794
        %v803 = vadd.f32 %v785, %v795
        %v804 = vadd.f32 %v786, %v796
        %v805 = vld [vmem:[#allocation6 + $0x2] sm:$0x1]
        %v806 = vperm.slane %v805, 0
        %v807 = vmul.f32 %v757, %v806
        %v808 = vmul.f32 %v758, %v806
        %v809 = vmul.f32 %v759, %v806
        %v810 = vmul.f32 %v760, %v806
        %v811 = vmul.f32 %v761, %v806
        %v812 = vmul.f32 %v762, %v806
        %v813 = vmul.f32 %v763, %v806
        %v814 = vmul.f32 %v764, %v806
        %v815 = vadd.f32 %v797, %v807
        %v816 = vadd.f32 %v798, %v808
        %v817 = vadd.f32 %v799, %v809
        %v818 = vadd.f32 %v800, %v810
        %v819 = vadd.f32 %v801, %v811
        %v820 = vadd.f32 %v802, %v812
        %v821 = vadd.f32 %v803, %v813
        %v822 = vadd.f32 %v804, %v814
        %v823 = vld [vmem:[#allocation6 + $0x3] sm:$0x1]
        %v824 = vperm.slane %v823, 0
        %v825 = vmul.f32 %v735, %v824
        %v826 = vmul.f32 %v736, %v824
        %v827 = vmul.f32 %v737, %v824
        %v828 = vmul.f32 %v738, %v824
        %v829 = vmul.f32 %v739, %v824
        %v830 = vmul.f32 %v740, %v824
        %v831 = vmul.f32 %v741, %v824
        %v832 = vmul.f32 %v742, %v824
        %v833 = vadd.f32 %v815, %v825
        %v834 = vadd.f32 %v816, %v826
        %v835 = vadd.f32 %v817, %v827
        %v836 = vadd.f32 %v818, %v828
        %v837 = vadd.f32 %v819, %v829
        %v838 = vadd.f32 %v820, %v830
        %v839 = vadd.f32 %v821, %v831
        %v840 = vadd.f32 %v822, %v832
        %v841 = vld [vmem:[#allocation6 + $0x4] sm:$0x1]
        %v842 = vperm.slane %v841, 0
        %v843 = vmul.f32 %v747, %v842
        %v844 = vmul.f32 %v748, %v842
        %v845 = vmul.f32 %v749, %v842
        %v846 = vmul.f32 %v750, %v842
        %v847 = vmul.f32 %v751, %v842
        %v848 = vmul.f32 %v752, %v842
        %v849 = vmul.f32 %v753, %v842
        %v850 = vmul.f32 %v754, %v842
        %v851 = vadd.f32 %v833, %v843
        %v852 = vadd.f32 %v834, %v844
        %v853 = vadd.f32 %v835, %v845
        %v854 = vadd.f32 %v836, %v846
        %v855 = vadd.f32 %v837, %v847
        %v856 = vadd.f32 %v838, %v848
        %v857 = vadd.f32 %v839, %v849
        %v858 = vadd.f32 %v840, %v850
        %v859 = vld [vmem:[#allocation6 + $0x5] sm:$0x1]
        %v860 = vperm.slane %v859, 0
        %v861 = vmul.f32 %v759, %v860
        %v862 = vmul.f32 %v760, %v860
        %v863 = vmul.f32 %v761, %v860
        %v864 = vmul.f32 %v762, %v860
        %v865 = vmul.f32 %v763, %v860
        %v866 = vmul.f32 %v764, %v860
        %v867 = vmul.f32 %v765, %v860
        %v868 = vmul.f32 %v766, %v860
        %v869 = vadd.f32 %v851, %v861
        %v870 = vadd.f32 %v852, %v862
        %v871 = vadd.f32 %v853, %v863
        %v872 = vadd.f32 %v854, %v864
        %v873 = vadd.f32 %v855, %v865
        %v874 = vadd.f32 %v856, %v866
        %v875 = vadd.f32 %v857, %v867
        %v876 = vadd.f32 %v858, %v868
        %v877 = vld [vmem:[#allocation6 + $0x6] sm:$0x1]
        %v878 = vperm.slane %v877, 0
        %v879 = vmul.f32 %v737, %v878
        %v880 = vmul.f32 %v738, %v878
        %v881 = vmul.f32 %v739, %v878
        %v882 = vmul.f32 %v740, %v878
        %v883 = vmul.f32 %v741, %v878
        %v884 = vmul.f32 %v742, %v878
        %v885 = vmul.f32 %v743, %v878
        %v886 = vmul.f32 %v744, %v878
        %v887 = vadd.f32 %v869, %v879
        %v888 = vadd.f32 %v870, %v880
        %v889 = vadd.f32 %v871, %v881
        %v890 = vadd.f32 %v872, %v882
        %v891 = vadd.f32 %v873, %v883
        %v892 = vadd.f32 %v874, %v884
        %v893 = vadd.f32 %v875, %v885
        %v894 = vadd.f32 %v876, %v886
        %v895 = vld [vmem:[#allocation6 + $0x7] sm:$0x1]
        %v896 = vperm.slane %v895, 0
        %v897 = vmul.f32 %v749, %v896
        %v898 = vmul.f32 %v750, %v896
        %v899 = vmul.f32 %v751, %v896
        %v900 = vmul.f32 %v752, %v896
        %v901 = vmul.f32 %v753, %v896
        %v902 = vmul.f32 %v754, %v896
        %v903 = vmul.f32 %v755, %v896
        %v904 = vmul.f32 %v756, %v896
        %v905 = vadd.f32 %v887, %v897
        %v906 = vadd.f32 %v888, %v898
        %v907 = vadd.f32 %v889, %v899
        %v908 = vadd.f32 %v890, %v900
        %v909 = vadd.f32 %v891, %v901
        %v910 = vadd.f32 %v892, %v902
        %v911 = vadd.f32 %v893, %v903
        %v912 = vadd.f32 %v894, %v904
        %v913 = vld [vmem:[#allocation6 + $0x8] sm:$0x1]
        %v914 = vperm.slane %v913, 0
        %v915 = vmul.f32 %v761, %v914
        %v916 = vmul.f32 %v762, %v914
        %v917 = vmul.f32 %v763, %v914
        %v918 = vmul.f32 %v764, %v914
        %v919 = vmul.f32 %v765, %v914
        %v920 = vmul.f32 %v766, %v914
        %v921 = vmul.f32 %v767, %v914
        %v922 = vmul.f32 %v768, %v914
        %v923 = vadd.f32 %v905, %v915
        %v924 = vadd.f32 %v906, %v916
        %v925 = vadd.f32 %v907, %v917
        %v926 = vadd.f32 %v908, %v918
        %v927 = vadd.f32 %v909, %v919
        %v928 = vadd.f32 %v910, %v920
        %v929 = vadd.f32 %v911, %v921
        %v930 = vadd.f32 %v912, %v922
        %v931 = vadd.f32 %v923, %v614
        %v932 = vadd.f32 %v924, %v614
        %v933 = vadd.f32 %v925, %v614
        %v934 = vadd.f32 %v926, %v614
        %v935 = vadd.f32 %v927, %v614
        %v936 = vadd.f32 %v928, %v614
        %v937 = vadd.f32 %v929, %v614
        %v938 = vadd.f32 %v930, %v614
        %v939 = vmax.f32 %v931, 0.0
        %v940 = vmax.f32 %v932, 0.0
        %v941 = vmax.f32 %v933, 0.0
        %v942 = vmax.f32 %v934, 0.0
        %v943 = vmax.f32 %v935, 0.0
        %v944 = vmax.f32 %v936, 0.0
        %v945 = vmax.f32 %v937, 0.0
        %v946 = vmax.f32 %v938, 0.0
        %v947 = vmin.f32 %v939, 6.0
        %v948 = vmin.f32 %v940, 6.0
        %v949 = vmin.f32 %v941, 6.0
        %v950 = vmin.f32 %v942, 6.0
        %v951 = vmin.f32 %v943, 6.0
        %v952 = vmin.f32 %v944, 6.0
        %v953 = vmin.f32 %v945, 6.0
        %v954 = vmin.f32 %v946, 6.0
        %v955 = vpack.c.bf16 %v948, %v947
        %v956 = vpack.c.bf16 %v950, %v949
        %v957 = vpack.c.bf16 %v952, %v951
        %v958 = vpack.c.bf16 %v954, %v953
        %959 = vmatpush.bf16.msra.mxu0 %v686
        %960 = vmatpush.bf16.msra.mxu0 %v685
        %961 = vmatpush.bf16.msra.mxu0 %v684
        %962 = vmatpush.bf16.msra.mxu0 %v683
        %963 = vmatpush.bf16.msra.mxu0 %v682
        %964 = vmatpush.bf16.msra.mxu0 %v681
        %965 = vmatpush.bf16.msra.mxu0 %v680
        %966 = vmatpush.bf16.msra.mxu0 %v679
        %967 = vmatmul.bf16.gmra.mxu0 %v955
        %v968 = vpop.f32.mrf.mxu0
        %v969 = vadd.f32 %v645, %v968
        %v970 = vpop.f32.mrf.mxu0
        %v971 = vadd.f32 %v645, %v970
        %972 = vmatmul.bf16.gmra.mxu0 %v956
        %v973 = vpop.f32.mrf.mxu0
        %v974 = vadd.f32 %v645, %v973
        %v975 = vpop.f32.mrf.mxu0
        %v976 = vadd.f32 %v645, %v975
        %977 = vmatmul.bf16.gmra.mxu0 %v957
        %v978 = vpop.f32.mrf.mxu0
        %v979 = vadd.f32 %v645, %v978
        %v980 = vpop.f32.mrf.mxu0
        %v981 = vadd.f32 %v645, %v980
        %982 = vmatmul.bf16.gmra.mxu0 %v958
        %v983 = vpop.f32.mrf.mxu0
        %v984 = vadd.f32 %v645, %v983
        %v985 = vpop.f32.mrf.mxu0
        %v986 = vadd.f32 %v645, %v985
        %987 = vdwg.mxu0
        %s988 = scalar_lea.vmem %s277, 64 [#allocation9]
        %989 = vst [vmem:[%s988] sm:$0xff] %v969
        %990 = vst [vmem:[%s988 + $0x8] sm:$0xff] %v971
        %991 = vst [vmem:[%s988 + $0x10] sm:$0xff] %v974
        %992 = vst [vmem:[%s988 + $0x18] sm:$0xff] %v976
        %993 = vst [vmem:[%s988 + $0x20] sm:$0xff] %v979
        %994 = vst [vmem:[%s988 + $0x28] sm:$0xff] %v981
        %995 = vst [vmem:[%s988 + $0x30] sm:$0xff] %v984
        %996 = vst [vmem:[%s988 + $0x38] sm:$0xff] %v986
        %s997 = scalar_lea.vmem [#allocation2], 192
        %v998 = vld [vmem:[%s997] sm:$0xff]
        %v999 = vld [vmem:[%s997 + $0x8] sm:$0xff]
        %v1000 = vld [vmem:[%s997 + $0x18] sm:$0xff]
        %v1001 = vld [vmem:[%s997 + $0x20] sm:$0xff]
        %v1002 = vld [vmem:[%s997 + $0x30] sm:$0xff]
        %v1003 = vld [vmem:[%s997 + $0x38] sm:$0xff]
        %v1004 = vld [vmem:[%s997 + $0x48] sm:$0xff]
        %v1005 = vld [vmem:[%s997 + $0x50] sm:$0xff]
        %v1006 = vld [vmem:[%s997 + $0x60] sm:$0xff]
        %v1007 = vld [vmem:[%s997 + $0x68] sm:$0xff]
        %v1008 = vld [vmem:[%s997 + $0x78] sm:$0xff]
        %v1009 = vld [vmem:[%s997 + $0x80] sm:$0xff]
        %v1010 = vld [vmem:[%s997 + $0x1] sm:$0xff]
        %v1011 = vld [vmem:[%s997 + $0x9] sm:$0xff]
        %v1012 = vld [vmem:[%s997 + $0x19] sm:$0xff]
        %v1013 = vld [vmem:[%s997 + $0x21] sm:$0xff]
        %v1014 = vld [vmem:[%s997 + $0x31] sm:$0xff]
        %v1015 = vld [vmem:[%s997 + $0x39] sm:$0xff]
        %v1016 = vld [vmem:[%s997 + $0x49] sm:$0xff]
        %v1017 = vld [vmem:[%s997 + $0x51] sm:$0xff]
        %v1018 = vld [vmem:[%s997 + $0x61] sm:$0xff]
        %v1019 = vld [vmem:[%s997 + $0x69] sm:$0xff]
        %v1020 = vld [vmem:[%s997 + $0x79] sm:$0xff]
        %v1021 = vld [vmem:[%s997 + $0x81] sm:$0xff]
        %v1022 = vld [vmem:[%s997 + $0x2] sm:$0xff]
        %v1023 = vld [vmem:[%s997 + $0xa] sm:$0xff]
        %v1024 = vld [vmem:[%s997 + $0x1a] sm:$0xff]
        %v1025 = vld [vmem:[%s997 + $0x22] sm:$0xff]
        %v1026 = vld [vmem:[%s997 + $0x32] sm:$0xff]
        %v1027 = vld [vmem:[%s997 + $0x3a] sm:$0xff]
        %v1028 = vld [vmem:[%s997 + $0x4a] sm:$0xff]
        %v1029 = vld [vmem:[%s997 + $0x52] sm:$0xff]
        %v1030 = vld [vmem:[%s997 + $0x62] sm:$0xff]
        %v1031 = vld [vmem:[%s997 + $0x6a] sm:$0xff]
        %v1032 = vld [vmem:[%s997 + $0x7a] sm:$0xff]
        %v1033 = vld [vmem:[%s997 + $0x82] sm:$0xff]
        %v1034 = vld [vmem:[#allocation6] sm:$0x1]
        %v1035 = vperm.slane %v1034, 0
        %v1036 = vmul.f32 %v998, %v1035
        %v1037 = vmul.f32 %v999, %v1035
        %v1038 = vmul.f32 %v1000, %v1035
        %v1039 = vmul.f32 %v1001, %v1035
        %v1040 = vmul.f32 %v1002, %v1035
        %v1041 = vmul.f32 %v1003, %v1035
        %v1042 = vmul.f32 %v1004, %v1035
        %v1043 = vmul.f32 %v1005, %v1035
        %v1044 = vadd.f32 %v1036, 0.0
        %v1045 = vadd.f32 %v1037, 0.0
        %v1046 = vadd.f32 %v1038, 0.0
        %v1047 = vadd.f32 %v1039, 0.0
        %v1048 = vadd.f32 %v1040, 0.0
        %v1049 = vadd.f32 %v1041, 0.0
        %v1050 = vadd.f32 %v1042, 0.0
        %v1051 = vadd.f32 %v1043, 0.0
        %v1052 = vld [vmem:[#allocation6 + $0x1] sm:$0x1]
        %v1053 = vperm.slane %v1052, 0
        %v1054 = vmul.f32 %v1010, %v1053
        %v1055 = vmul.f32 %v1011, %v1053
        %v1056 = vmul.f32 %v1012, %v1053
        %v1057 = vmul.f32 %v1013, %v1053
        %v1058 = vmul.f32 %v1014, %v1053
        %v1059 = vmul.f32 %v1015, %v1053
        %v1060 = vmul.f32 %v1016, %v1053
        %v1061 = vmul.f32 %v1017, %v1053
        %v1062 = vadd.f32 %v1044, %v1054
        %v1063 = vadd.f32 %v1045, %v1055
        %v1064 = vadd.f32 %v1046, %v1056
        %v1065 = vadd.f32 %v1047, %v1057
        %v1066 = vadd.f32 %v1048, %v1058
        %v1067 = vadd.f32 %v1049, %v1059
        %v1068 = vadd.f32 %v1050, %v1060
        %v1069 = vadd.f32 %v1051, %v1061
        %v1070 = vld [vmem:[#allocation6 + $0x2] sm:$0x1]
        %v1071 = vperm.slane %v1070, 0
        %v1072 = vmul.f32 %v1022, %v1071
        %v1073 = vmul.f32 %v1023, %v1071
        %v1074 = vmul.f32 %v1024, %v1071
        %v1075 = vmul.f32 %v1025, %v1071
        %v1076 = vmul.f32 %v1026, %v1071
        %v1077 = vmul.f32 %v1027, %v1071
        %v1078 = vmul.f32 %v1028, %v1071
        %v1079 = vmul.f32 %v1029, %v1071
        %v1080 = vadd.f32 %v1062, %v1072
        %v1081 = vadd.f32 %v1063, %v1073
        %v1082 = vadd.f32 %v1064, %v1074
        %v1083 = vadd.f32 %v1065, %v1075
        %v1084 = vadd.f32 %v1066, %v1076
        %v1085 = vadd.f32 %v1067, %v1077
        %v1086 = vadd.f32 %v1068, %v1078
        %v1087 = vadd.f32 %v1069, %v1079
        %v1088 = vld [vmem:[#allocation6 + $0x3] sm:$0x1]
        %v1089 = vperm.slane %v1088, 0
        %v1090 = vmul.f32 %v1000, %v1089
        %v1091 = vmul.f32 %v1001, %v1089
        %v1092 = vmul.f32 %v1002, %v1089
        %v1093 = vmul.f32 %v1003, %v1089
        %v1094 = vmul.f32 %v1004, %v1089
        %v1095 = vmul.f32 %v1005, %v1089
        %v1096 = vmul.f32 %v1006, %v1089
        %v1097 = vmul.f32 %v1007, %v1089
        %v1098 = vadd.f32 %v1080, %v1090
        %v1099 = vadd.f32 %v1081, %v1091
        %v1100 = vadd.f32 %v1082, %v1092
        %v1101 = vadd.f32 %v1083, %v1093
        %v1102 = vadd.f32 %v1084, %v1094
        %v1103 = vadd.f32 %v1085, %v1095
        %v1104 = vadd.f32 %v1086, %v1096
        %v1105 = vadd.f32 %v1087, %v1097
        %v1106 = vld [vmem:[#allocation6 + $0x4] sm:$0x1]
        %v1107 = vperm.slane %v1106, 0
        %v1108 = vmul.f32 %v1012, %v1107
        %v1109 = vmul.f32 %v1013, %v1107
        %v1110 = vmul.f32 %v1014, %v1107
        %v1111 = vmul.f32 %v1015, %v1107
        %v1112 = vmul.f32 %v1016, %v1107
        %v1113 = vmul.f32 %v1017, %v1107
        %v1114 = vmul.f32 %v1018, %v1107
        %v1115 = vmul.f32 %v1019, %v1107
        %v1116 = vadd.f32 %v1098, %v1108
        %v1117 = vadd.f32 %v1099, %v1109
        %v1118 = vadd.f32 %v1100, %v1110
        %v1119 = vadd.f32 %v1101, %v1111
        %v1120 = vadd.f32 %v1102, %v1112
        %v1121 = vadd.f32 %v1103, %v1113
        %v1122 = vadd.f32 %v1104, %v1114
        %v1123 = vadd.f32 %v1105, %v1115
        %v1124 = vld [vmem:[#allocation6 + $0x5] sm:$0x1]
        %v1125 = vperm.slane %v1124, 0
        %v1126 = vmul.f32 %v1024, %v1125
        %v1127 = vmul.f32 %v1025, %v1125
        %v1128 = vmul.f32 %v1026, %v1125
        %v1129 = vmul.f32 %v1027, %v1125
        %v1130 = vmul.f32 %v1028, %v1125
        %v1131 = vmul.f32 %v1029, %v1125
        %v1132 = vmul.f32 %v1030, %v1125
        %v1133 = vmul.f32 %v1031, %v1125
        %v1134 = vadd.f32 %v1116, %v1126
        %v1135 = vadd.f32 %v1117, %v1127
        %v1136 = vadd.f32 %v1118, %v1128
        %v1137 = vadd.f32 %v1119, %v1129
        %v1138 = vadd.f32 %v1120, %v1130
        %v1139 = vadd.f32 %v1121, %v1131
        %v1140 = vadd.f32 %v1122, %v1132
        %v1141 = vadd.f32 %v1123, %v1133
        %v1142 = vld [vmem:[#allocation6 + $0x6] sm:$0x1]
        %v1143 = vperm.slane %v1142, 0
        %v1144 = vmul.f32 %v1002, %v1143
        %v1145 = vmul.f32 %v1003, %v1143
        %v1146 = vmul.f32 %v1004, %v1143
        %v1147 = vmul.f32 %v1005, %v1143
        %v1148 = vmul.f32 %v1006, %v1143
        %v1149 = vmul.f32 %v1007, %v1143
        %v1150 = vmul.f32 %v1008, %v1143
        %v1151 = vmul.f32 %v1009, %v1143
        %v1152 = vadd.f32 %v1134, %v1144
        %v1153 = vadd.f32 %v1135, %v1145
        %v1154 = vadd.f32 %v1136, %v1146
        %v1155 = vadd.f32 %v1137, %v1147
        %v1156 = vadd.f32 %v1138, %v1148
        %v1157 = vadd.f32 %v1139, %v1149
        %v1158 = vadd.f32 %v1140, %v1150
        %v1159 = vadd.f32 %v1141, %v1151
        %v1160 = vld [vmem:[#allocation6 + $0x7] sm:$0x1]
        %v1161 = vperm.slane %v1160, 0
        %v1162 = vmul.f32 %v1014, %v1161
        %v1163 = vmul.f32 %v1015, %v1161
        %v1164 = vmul.f32 %v1016, %v1161
        %v1165 = vmul.f32 %v1017, %v1161
        %v1166 = vmul.f32 %v1018, %v1161
        %v1167 = vmul.f32 %v1019, %v1161
        %v1168 = vmul.f32 %v1020, %v1161
        %v1169 = vmul.f32 %v1021, %v1161
        %v1170 = vadd.f32 %v1152, %v1162
        %v1171 = vadd.f32 %v1153, %v1163
        %v1172 = vadd.f32 %v1154, %v1164
        %v1173 = vadd.f32 %v1155, %v1165
        %v1174 = vadd.f32 %v1156, %v1166
        %v1175 = vadd.f32 %v1157, %v1167
        %v1176 = vadd.f32 %v1158, %v1168
        %v1177 = vadd.f32 %v1159, %v1169
        %v1178 = vld [vmem:[#allocation6 + $0x8] sm:$0x1]
        %v1179 = vperm.slane %v1178, 0
        %v1180 = vmul.f32 %v1026, %v1179
        %v1181 = vmul.f32 %v1027, %v1179
        %v1182 = vmul.f32 %v1028, %v1179
        %v1183 = vmul.f32 %v1029, %v1179
        %v1184 = vmul.f32 %v1030, %v1179
        %v1185 = vmul.f32 %v1031, %v1179
        %v1186 = vmul.f32 %v1032, %v1179
        %v1187 = vmul.f32 %v1033, %v1179
        %v1188 = vadd.f32 %v1170, %v1180
        %v1189 = vadd.f32 %v1171, %v1181
        %v1190 = vadd.f32 %v1172, %v1182
        %v1191 = vadd.f32 %v1173, %v1183
        %v1192 = vadd.f32 %v1174, %v1184
        %v1193 = vadd.f32 %v1175, %v1185
        %v1194 = vadd.f32 %v1176, %v1186
        %v1195 = vadd.f32 %v1177, %v1187
        %v1196 = vadd.f32 %v1188, %v614
        %v1197 = vadd.f32 %v1189, %v614
        %v1198 = vadd.f32 %v1190, %v614
        %v1199 = vadd.f32 %v1191, %v614
        %v1200 = vadd.f32 %v1192, %v614
        %v1201 = vadd.f32 %v1193, %v614
        %v1202 = vadd.f32 %v1194, %v614
        %v1203 = vadd.f32 %v1195, %v614
        %v1204 = vmax.f32 %v1196, 0.0
        %v1205 = vmax.f32 %v1197, 0.0
        %v1206 = vmax.f32 %v1198, 0.0
        %v1207 = vmax.f32 %v1199, 0.0
        %v1208 = vmax.f32 %v1200, 0.0
        %v1209 = vmax.f32 %v1201, 0.0
        %v1210 = vmax.f32 %v1202, 0.0
        %v1211 = vmax.f32 %v1203, 0.0
        %v1212 = vmin.f32 %v1204, 6.0
        %v1213 = vmin.f32 %v1205, 6.0
        %v1214 = vmin.f32 %v1206, 6.0
        %v1215 = vmin.f32 %v1207, 6.0
        %v1216 = vmin.f32 %v1208, 6.0
        %v1217 = vmin.f32 %v1209, 6.0
        %v1218 = vmin.f32 %v1210, 6.0
        %v1219 = vmin.f32 %v1211, 6.0
        %v1220 = vpack.c.bf16 %v1213, %v1212
        %v1221 = vpack.c.bf16 %v1215, %v1214
        %v1222 = vpack.c.bf16 %v1217, %v1216
        %v1223 = vpack.c.bf16 %v1219, %v1218
        %1224 = vmatpush.bf16.msra.mxu0 %v686
        %1225 = vmatpush.bf16.msra.mxu0 %v685
        %1226 = vmatpush.bf16.msra.mxu0 %v684
        %1227 = vmatpush.bf16.msra.mxu0 %v683
        %1228 = vmatpush.bf16.msra.mxu0 %v682
        %1229 = vmatpush.bf16.msra.mxu0 %v681
        %1230 = vmatpush.bf16.msra.mxu0 %v680
        %1231 = vmatpush.bf16.msra.mxu0 %v679
        %1232 = vmatmul.bf16.gmra.mxu0 %v1220
        %v1233 = vpop.f32.mrf.mxu0
        %v1234 = vadd.f32 %v645, %v1233
        %v1235 = vpop.f32.mrf.mxu0
        %v1236 = vadd.f32 %v645, %v1235
        %1237 = vmatmul.bf16.gmra.mxu0 %v1221
        %v1238 = vpop.f32.mrf.mxu0
        %v1239 = vadd.f32 %v645, %v1238
        %v1240 = vpop.f32.mrf.mxu0
        %v1241 = vadd.f32 %v645, %v1240
        %1242 = vmatmul.bf16.gmra.mxu0 %v1222
        %v1243 = vpop.f32.mrf.mxu0
        %v1244 = vadd.f32 %v645, %v1243
        %v1245 = vpop.f32.mrf.mxu0
        %v1246 = vadd.f32 %v645, %v1245
        %1247 = vmatmul.bf16.gmra.mxu0 %v1223
        %v1248 = vpop.f32.mrf.mxu0
        %v1249 = vadd.f32 %v645, %v1248
        %v1250 = vpop.f32.mrf.mxu0
        %v1251 = vadd.f32 %v645, %v1250
        %1252 = vdwg.mxu0
        %s1253 = scalar_lea.vmem %s277, 128 [#allocation9]
        %1254 = vst [vmem:[%s1253] sm:$0xff] %v1234
        %1255 = vst [vmem:[%s1253 + $0x8] sm:$0xff] %v1236
        %1256 = vst [vmem:[%s1253 + $0x10] sm:$0xff] %v1239
        %1257 = vst [vmem:[%s1253 + $0x18] sm:$0xff] %v1241
        %1258 = vst [vmem:[%s1253 + $0x20] sm:$0xff] %v1244
        %1259 = vst [vmem:[%s1253 + $0x28] sm:$0xff] %v1246
        %1260 = vst [vmem:[%s1253 + $0x30] sm:$0xff] %v1249
        %1261 = vst [vmem:[%s1253 + $0x38] sm:$0xff] %v1251
        %s1262 = scalar_lea.vmem [#allocation2], 288
        %v1263 = vld [vmem:[%s1262] sm:$0xff]
        %v1264 = vld [vmem:[%s1262 + $0x8] sm:$0xff]
        %v1265 = vld [vmem:[%s1262 + $0x18] sm:$0xff]
        %v1266 = vld [vmem:[%s1262 + $0x20] sm:$0xff]
        %v1267 = vld [vmem:[%s1262 + $0x30] sm:$0xff]
        %v1268 = vld [vmem:[%s1262 + $0x38] sm:$0xff]
        %v1269 = vld [vmem:[%s1262 + $0x48] sm:$0xff]
        %v1270 = vld [vmem:[%s1262 + $0x50] sm:$0xff]
        %v1271 = vld [vmem:[%s1262 + $0x60] sm:$0xff]
        %v1272 = vld [vmem:[%s1262 + $0x68] sm:$0xff]
        %v1273 = vld [vmem:[%s1262 + $0x78] sm:$0xff]
        %v1274 = vld [vmem:[%s1262 + $0x80] sm:$0xff]
        %v1275 = vld [vmem:[%s1262 + $0x1] sm:$0xff]
        %v1276 = vld [vmem:[%s1262 + $0x9] sm:$0xff]
        %v1277 = vld [vmem:[%s1262 + $0x19] sm:$0xff]
        %v1278 = vld [vmem:[%s1262 + $0x21] sm:$0xff]
        %v1279 = vld [vmem:[%s1262 + $0x31] sm:$0xff]
        %v1280 = vld [vmem:[%s1262 + $0x39] sm:$0xff]
        %v1281 = vld [vmem:[%s1262 + $0x49] sm:$0xff]
        %v1282 = vld [vmem:[%s1262 + $0x51] sm:$0xff]
        %v1283 = vld [vmem:[%s1262 + $0x61] sm:$0xff]
        %v1284 = vld [vmem:[%s1262 + $0x69] sm:$0xff]
        %v1285 = vld [vmem:[%s1262 + $0x79] sm:$0xff]
        %v1286 = vld [vmem:[%s1262 + $0x81] sm:$0xff]
        %v1287 = vld [vmem:[%s1262 + $0x2] sm:$0xff]
        %v1288 = vld [vmem:[%s1262 + $0xa] sm:$0xff]
        %v1289 = vld [vmem:[%s1262 + $0x1a] sm:$0xff]
        %v1290 = vld [vmem:[%s1262 + $0x22] sm:$0xff]
        %v1291 = vld [vmem:[%s1262 + $0x32] sm:$0xff]
        %v1292 = vld [vmem:[%s1262 + $0x3a] sm:$0xff]
        %v1293 = vld [vmem:[%s1262 + $0x4a] sm:$0xff]
        %v1294 = vld [vmem:[%s1262 + $0x52] sm:$0xff]
        %v1295 = vld [vmem:[%s1262 + $0x62] sm:$0xff]
        %v1296 = vld [vmem:[%s1262 + $0x6a] sm:$0xff]
        %v1297 = vld [vmem:[%s1262 + $0x7a] sm:$0xff]
        %v1298 = vld [vmem:[%s1262 + $0x82] sm:$0xff]
        %v1299 = vld [vmem:[#allocation6] sm:$0x1]
        %v1300 = vperm.slane %v1299, 0
        %v1301 = vmul.f32 %v1263, %v1300
        %v1302 = vmul.f32 %v1264, %v1300
        %v1303 = vmul.f32 %v1265, %v1300
        %v1304 = vmul.f32 %v1266, %v1300
        %v1305 = vmul.f32 %v1267, %v1300
        %v1306 = vmul.f32 %v1268, %v1300
        %v1307 = vmul.f32 %v1269, %v1300
        %v1308 = vmul.f32 %v1270, %v1300
        %v1309 = vadd.f32 %v1301, 0.0
        %v1310 = vadd.f32 %v1302, 0.0
        %v1311 = vadd.f32 %v1303, 0.0
        %v1312 = vadd.f32 %v1304, 0.0
        %v1313 = vadd.f32 %v1305, 0.0
        %v1314 = vadd.f32 %v1306, 0.0
        %v1315 = vadd.f32 %v1307, 0.0
        %v1316 = vadd.f32 %v1308, 0.0
        %v1317 = vld [vmem:[#allocation6 + $0x1] sm:$0x1]
        %v1318 = vperm.slane %v1317, 0
        %v1319 = vmul.f32 %v1275, %v1318
        %v1320 = vmul.f32 %v1276, %v1318
        %v1321 = vmul.f32 %v1277, %v1318
        %v1322 = vmul.f32 %v1278, %v1318
        %v1323 = vmul.f32 %v1279, %v1318
        %v1324 = vmul.f32 %v1280, %v1318
        %v1325 = vmul.f32 %v1281, %v1318
        %v1326 = vmul.f32 %v1282, %v1318
        %v1327 = vadd.f32 %v1309, %v1319
        %v1328 = vadd.f32 %v1310, %v1320
        %v1329 = vadd.f32 %v1311, %v1321
        %v1330 = vadd.f32 %v1312, %v1322
        %v1331 = vadd.f32 %v1313, %v1323
        %v1332 = vadd.f32 %v1314, %v1324
        %v1333 = vadd.f32 %v1315, %v1325
        %v1334 = vadd.f32 %v1316, %v1326
        %v1335 = vld [vmem:[#allocation6 + $0x2] sm:$0x1]
        %v1336 = vperm.slane %v1335, 0
        %v1337 = vmul.f32 %v1287, %v1336
        %v1338 = vmul.f32 %v1288, %v1336
        %v1339 = vmul.f32 %v1289, %v1336
        %v1340 = vmul.f32 %v1290, %v1336
        %v1341 = vmul.f32 %v1291, %v1336
        %v1342 = vmul.f32 %v1292, %v1336
        %v1343 = vmul.f32 %v1293, %v1336
        %v1344 = vmul.f32 %v1294, %v1336
        %v1345 = vadd.f32 %v1327, %v1337
        %v1346 = vadd.f32 %v1328, %v1338
        %v1347 = vadd.f32 %v1329, %v1339
        %v1348 = vadd.f32 %v1330, %v1340
        %v1349 = vadd.f32 %v1331, %v1341
        %v1350 = vadd.f32 %v1332, %v1342
        %v1351 = vadd.f32 %v1333, %v1343
        %v1352 = vadd.f32 %v1334, %v1344
        %v1353 = vld [vmem:[#allocation6 + $0x3] sm:$0x1]
        %v1354 = vperm.slane %v1353, 0
        %v1355 = vmul.f32 %v1265, %v1354
        %v1356 = vmul.f32 %v1266, %v1354
        %v1357 = vmul.f32 %v1267, %v1354
        %v1358 = vmul.f32 %v1268, %v1354
        %v1359 = vmul.f32 %v1269, %v1354
        %v1360 = vmul.f32 %v1270, %v1354
        %v1361 = vmul.f32 %v1271, %v1354
        %v1362 = vmul.f32 %v1272, %v1354
        %v1363 = vadd.f32 %v1345, %v1355
        %v1364 = vadd.f32 %v1346, %v1356
        %v1365 = vadd.f32 %v1347, %v1357
        %v1366 = vadd.f32 %v1348, %v1358
        %v1367 = vadd.f32 %v1349, %v1359
        %v1368 = vadd.f32 %v1350, %v1360
        %v1369 = vadd.f32 %v1351, %v1361
        %v1370 = vadd.f32 %v1352, %v1362
        %v1371 = vld [vmem:[#allocation6 + $0x4] sm:$0x1]
        %v1372 = vperm.slane %v1371, 0
        %v1373 = vmul.f32 %v1277, %v1372
        %v1374 = vmul.f32 %v1278, %v1372
        %v1375 = vmul.f32 %v1279, %v1372
        %v1376 = vmul.f32 %v1280, %v1372
        %v1377 = vmul.f32 %v1281, %v1372
        %v1378 = vmul.f32 %v1282, %v1372
        %v1379 = vmul.f32 %v1283, %v1372
        %v1380 = vmul.f32 %v1284, %v1372
        %v1381 = vadd.f32 %v1363, %v1373
        %v1382 = vadd.f32 %v1364, %v1374
        %v1383 = vadd.f32 %v1365, %v1375
        %v1384 = vadd.f32 %v1366, %v1376
        %v1385 = vadd.f32 %v1367, %v1377
        %v1386 = vadd.f32 %v1368, %v1378
        %v1387 = vadd.f32 %v1369, %v1379
        %v1388 = vadd.f32 %v1370, %v1380
        %v1389 = vld [vmem:[#allocation6 + $0x5] sm:$0x1]
        %v1390 = vperm.slane %v1389, 0
        %v1391 = vmul.f32 %v1289, %v1390
        %v1392 = vmul.f32 %v1290, %v1390
        %v1393 = vmul.f32 %v1291, %v1390
        %v1394 = vmul.f32 %v1292, %v1390
        %v1395 = vmul.f32 %v1293, %v1390
        %v1396 = vmul.f32 %v1294, %v1390
        %v1397 = vmul.f32 %v1295, %v1390
        %v1398 = vmul.f32 %v1296, %v1390
        %v1399 = vadd.f32 %v1381, %v1391
        %v1400 = vadd.f32 %v1382, %v1392
        %v1401 = vadd.f32 %v1383, %v1393
        %v1402 = vadd.f32 %v1384, %v1394
        %v1403 = vadd.f32 %v1385, %v1395
        %v1404 = vadd.f32 %v1386, %v1396
        %v1405 = vadd.f32 %v1387, %v1397
        %v1406 = vadd.f32 %v1388, %v1398
        %v1407 = vld [vmem:[#allocation6 + $0x6] sm:$0x1]
        %v1408 = vperm.slane %v1407, 0
        %v1409 = vmul.f32 %v1267, %v1408
        %v1410 = vmul.f32 %v1268, %v1408
        %v1411 = vmul.f32 %v1269, %v1408
        %v1412 = vmul.f32 %v1270, %v1408
        %v1413 = vmul.f32 %v1271, %v1408
        %v1414 = vmul.f32 %v1272, %v1408
        %v1415 = vmul.f32 %v1273, %v1408
        %v1416 = vmul.f32 %v1274, %v1408
        %v1417 = vadd.f32 %v1399, %v1409
        %v1418 = vadd.f32 %v1400, %v1410
        %v1419 = vadd.f32 %v1401, %v1411
        %v1420 = vadd.f32 %v1402, %v1412
        %v1421 = vadd.f32 %v1403, %v1413
        %v1422 = vadd.f32 %v1404, %v1414
        %v1423 = vadd.f32 %v1405, %v1415
        %v1424 = vadd.f32 %v1406, %v1416
        %v1425 = vld [vmem:[#allocation6 + $0x7] sm:$0x1]
        %v1426 = vperm.slane %v1425, 0
        %v1427 = vmul.f32 %v1279, %v1426
        %v1428 = vmul.f32 %v1280, %v1426
        %v1429 = vmul.f32 %v1281, %v1426
        %v1430 = vmul.f32 %v1282, %v1426
        %v1431 = vmul.f32 %v1283, %v1426
        %v1432 = vmul.f32 %v1284, %v1426
        %v1433 = vmul.f32 %v1285, %v1426
        %v1434 = vmul.f32 %v1286, %v1426
        %v1435 = vadd.f32 %v1417, %v1427
        %v1436 = vadd.f32 %v1418, %v1428
        %v1437 = vadd.f32 %v1419, %v1429
        %v1438 = vadd.f32 %v1420, %v1430
        %v1439 = vadd.f32 %v1421, %v1431
        %v1440 = vadd.f32 %v1422, %v1432
        %v1441 = vadd.f32 %v1423, %v1433
        %v1442 = vadd.f32 %v1424, %v1434
        %v1443 = vld [vmem:[#allocation6 + $0x8] sm:$0x1]
        %v1444 = vperm.slane %v1443, 0
        %v1445 = vmul.f32 %v1291, %v1444
        %v1446 = vmul.f32 %v1292, %v1444
        %v1447 = vmul.f32 %v1293, %v1444
        %v1448 = vmul.f32 %v1294, %v1444
        %v1449 = vmul.f32 %v1295, %v1444
        %v1450 = vmul.f32 %v1296, %v1444
        %v1451 = vmul.f32 %v1297, %v1444
        %v1452 = vmul.f32 %v1298, %v1444
        %v1453 = vadd.f32 %v1435, %v1445
        %v1454 = vadd.f32 %v1436, %v1446
        %v1455 = vadd.f32 %v1437, %v1447
        %v1456 = vadd.f32 %v1438, %v1448
        %v1457 = vadd.f32 %v1439, %v1449
        %v1458 = vadd.f32 %v1440, %v1450
        %v1459 = vadd.f32 %v1441, %v1451
        %v1460 = vadd.f32 %v1442, %v1452
        %v1461 = vadd.f32 %v1453, %v614
        %v1462 = vadd.f32 %v1454, %v614
        %v1463 = vadd.f32 %v1455, %v614
        %v1464 = vadd.f32 %v1456, %v614
        %v1465 = vadd.f32 %v1457, %v614
        %v1466 = vadd.f32 %v1458, %v614
        %v1467 = vadd.f32 %v1459, %v614
        %v1468 = vadd.f32 %v1460, %v614
        %v1469 = vmax.f32 %v1461, 0.0
        %v1470 = vmax.f32 %v1462, 0.0
        %v1471 = vmax.f32 %v1463, 0.0
        %v1472 = vmax.f32 %v1464, 0.0
        %v1473 = vmax.f32 %v1465, 0.0
        %v1474 = vmax.f32 %v1466, 0.0
        %v1475 = vmax.f32 %v1467, 0.0
        %v1476 = vmax.f32 %v1468, 0.0
        %v1477 = vmin.f32 %v1469, 6.0
        %v1478 = vmin.f32 %v1470, 6.0
        %v1479 = vmin.f32 %v1471, 6.0
        %v1480 = vmin.f32 %v1472, 6.0
        %v1481 = vmin.f32 %v1473, 6.0
        %v1482 = vmin.f32 %v1474, 6.0
        %v1483 = vmin.f32 %v1475, 6.0
        %v1484 = vmin.f32 %v1476, 6.0
        %v1485 = vpack.c.bf16 %v1478, %v1477
        %v1486 = vpack.c.bf16 %v1480, %v1479
        %v1487 = vpack.c.bf16 %v1482, %v1481
        %v1488 = vpack.c.bf16 %v1484, %v1483
        %1489 = vmatpush.bf16.msra.mxu0 %v686
        %1490 = vmatpush.bf16.msra.mxu0 %v685
        %1491 = vmatpush.bf16.msra.mxu0 %v684
        %1492 = vmatpush.bf16.msra.mxu0 %v683
        %1493 = vmatpush.bf16.msra.mxu0 %v682
        %1494 = vmatpush.bf16.msra.mxu0 %v681
        %1495 = vmatpush.bf16.msra.mxu0 %v680
        %1496 = vmatpush.bf16.msra.mxu0 %v679
        %1497 = vmatmul.bf16.gmra.mxu0 %v1485
        %v1498 = vpop.f32.mrf.mxu0
        %v1499 = vadd.f32 %v645, %v1498
        %v1500 = vpop.f32.mrf.mxu0
        %v1501 = vadd.f32 %v645, %v1500
        %1502 = vmatmul.bf16.gmra.mxu0 %v1486
        %v1503 = vpop.f32.mrf.mxu0
        %v1504 = vadd.f32 %v645, %v1503
        %v1505 = vpop.f32.mrf.mxu0
        %v1506 = vadd.f32 %v645, %v1505
        %1507 = vmatmul.bf16.gmra.mxu0 %v1487
        %v1508 = vpop.f32.mrf.mxu0
        %v1509 = vadd.f32 %v645, %v1508
        %v1510 = vpop.f32.mrf.mxu0
        %v1511 = vadd.f32 %v645, %v1510
        %1512 = vmatmul.bf16.gmra.mxu0 %v1488
        %v1513 = vpop.f32.mrf.mxu0
        %v1514 = vadd.f32 %v645, %v1513
        %v1515 = vpop.f32.mrf.mxu0
        %v1516 = vadd.f32 %v645, %v1515
        %1517 = vdwg.mxu0
        %s1518 = scalar_lea.vmem %s277, 192 [#allocation9]
        %1519 = vst [vmem:[%s1518] sm:$0xff] %v1499
        %1520 = vst [vmem:[%s1518 + $0x8] sm:$0xff] %v1501
        %1521 = vst [vmem:[%s1518 + $0x10] sm:$0xff] %v1504
        %1522 = vst [vmem:[%s1518 + $0x18] sm:$0xff] %v1506
        %1523 = vst [vmem:[%s1518 + $0x20] sm:$0xff] %v1509
        %1524 = vst [vmem:[%s1518 + $0x28] sm:$0xff] %v1511
        %1525 = vst [vmem:[%s1518 + $0x30] sm:$0xff] %v1514
        %1526 = vst [vmem:[%s1518 + $0x38] sm:$0xff] %v1516
        %s1527 = sand.u32 %s141, 1
        %s1528 = scalar_lea.sflag [#allocation5], %s1527
        %s1529 = sand.u32 %s141, 1
        %s1530 = smul.addr %s1529, 256
        %s1531 = scalar_lea.vmem [#allocation9], %s1530
        // Predicated region
        $region53: #{tpu_custom_call.1} parent=39 // pred_check
          %p1532 = pneg %p151
        $region54: #{tpu_custom_call.1} parent=39 // pred_check_branch
          %1534 = sbr.rel (%p1532) target = $region56
        $region55: #{tpu_custom_call.1} parent=39 // pred_region
          %1536 = vsyncadd %s1528, 0
          %s1537 = smul.addr %s23, 32
          %s1538 = smul.addr %s1537, 8
          %s1539 = scalar_lea.hbm %s5, %s1538
          %s1540 = sshll.u32 %s1531, 4
          %s1541 = int_to_ptr.vmem [resolvable:$true] %s1540
          %s1542 = sshll.u32 %s1539, 4
          %s1543 = int_to_ptr.hbm [resolvable:$true] %s1542
          %1548 = dma.vmem_to_hbm [thread:$0]  %s1541, 4096, %s1543, %s1528, 128, 128, 8
        $region56: #{tpu_custom_call.1} parent=39 // pred_fallthru
          _
      $region40: #{tpu_custom_call.1} parent=5 // pred_fallthru
        _
      %p1549 = scmp.le.s32.totalorder 2, %s18
      // Predicated region
      $region57: #{tpu_custom_call.1} parent=5 // pred_check
        %p1550 = pneg %p1549
      $region58: #{tpu_custom_call.1} parent=5 // pred_check_branch
        %1552 = sbr.rel (%p1550) target = $region60
      $region59: #{tpu_custom_call.1} parent=5 // pred_region
        %s1553 = ssub.s32 %s18, 2
        // Predicated region
        $region61: #{tpu_custom_call.1} parent=59 // pred_check
          %p1554 = pneg %p157
        $region62: #{tpu_custom_call.1} parent=59 // pred_check_branch
          %1556 = sbr.rel (%p1554) target = $region64
        $region63: #{tpu_custom_call.1} parent=59 // pred_region
          %s1557 = sand.u32 %s142, 1
          %s1558 = scalar_lea.sflag [#allocation5], %s1557
          %s1559 = sand.u32 %s142, 1
          %s1560 = smul.addr %s1559, 256
          %s1561 = scalar_lea.vmem [#allocation9], %s1560
          %1563 = dma.done %s1558, 4096
        $region64: #{tpu_custom_call.1} parent=59 // pred_fallthru
          _
      $region60: #{tpu_custom_call.1} parent=5 // pred_fallthru
        _
    $region6: #{tpu_custom_call.1} parent=1 // loop_footer
      %s22 = sadd.s32 1, %s18
    $region7: #{tpu_custom_call.1} parent=1 // loop_footer_branch
      %17 = sbr.rel target = $region3
    $region8: #{tpu_custom_call.1} parent=1 // loop_exit
      _
    %1564 = vsyncpa [#allocation4], 1
    %s1565 = scalar_lea.sflag [#allocation4], 1
    %1566 = vsyncpa %s1565, 1
    %1567 = vsyncpa [#allocation7], 1
    %1568 = vsyncpa [#allocation5], 1
    %s1569 = scalar_lea.sflag [#allocation5], 1
    %1570 = vsyncpa %s1569, 1

</llo_original>
